<compile_context>
chip_gen: v7x
topology: tpu7x:2x2x1
jax: 0.10.0
libtpu: 0.0.40
codegen_flags: <defaults>
</compile_context>

<pallas_src>
import jax
import jax.numpy as jnp
from jax.experimental import pallas as pl
from jax.experimental.pallas import tpu as pltpu

IN_SIZE = 34 * 13          # 442 logical input features (streamed at full width)
H1, H2, H3 = 512, 256, 256
OUT_SIZE = 34              # logical outputs
OUT_PAD = 128              # lane-dense padded output width
NEG_BIG = -1e30            # bias for padded logit lanes -> exp underflows to 0
MAX_TILE_B = 1024          # cap on batch-tile rows (keeps streamed tiles ~few MiB)


def _device_kind():
    try:
        return jax.devices()[0].device_kind.lower()
    except Exception:
        return ""


def _round_up(n, m):
    return ((n + m - 1) // m) * m


def _choose_tile_b(B):
    """Adaptive batch tile.

    - small B: TB = round_up(B, 16) (bf16 sublane tile), no 128/256-row padding
    - large B: tiles capped at MAX_TILE_B rows to amortize per-step overhead
    - v7x: tile count rounded to a multiple of 2 so both TensorCores are busy
    """
    kind = _device_kind()
    n_tc = 2 if "v7" in kind else 1
    n_tiles = max(n_tc, -(-B // MAX_TILE_B))        # at least one tile per core
    n_tiles = -(-n_tiles // n_tc) * n_tc            # balanced megacore split
    return _round_up(-(-B // n_tiles), 16)


def _mlp_kernel(x_ref,
                w1_ref, b1_ref,
                w2_ref, b2_ref,
                w3_ref, b3_ref,
                w4_ref, b4_ref,
                o_ref):
    # Whole MLP fused for one batch tile: 3x (bf16 matmul + f32 bias + ReLU),
    # final matmul + bias + row-softmax.  Weights stay resident across the grid.
    x = x_ref[...].astype(jnp.bfloat16)                               # [TB, 442]

    h = jnp.dot(x, w1_ref[...], preferred_element_type=jnp.float32) + b1_ref[...]
    h = jnp.maximum(h, 0.0)

    h = jnp.dot(h.astype(jnp.bfloat16), w2_ref[...],
                preferred_element_type=jnp.float32) + b2_ref[...]
    h = jnp.maximum(h, 0.0)

    h = jnp.dot(h.astype(jnp.bfloat16), w3_ref[...],
                preferred_element_type=jnp.float32) + b3_ref[...]
    h = jnp.maximum(h, 0.0)

    logits = jnp.dot(h.astype(jnp.bfloat16), w4_ref[...],
                     preferred_element_type=jnp.float32) + b4_ref[...]

    # Softmax over the last axis.  Padded lanes carry a -1e30 bias, so they
    # contribute exp(-huge) == 0 to the denominator (no dilution).
    m = jnp.max(logits, axis=-1, keepdims=True)
    e = jnp.exp(logits - m)
    denom = jnp.sum(e, axis=-1, keepdims=True)
    o_ref[...] = (e * pl.reciprocal(denom, approx=True)).astype(o_ref.dtype)


def prepare_params(params):
    """Cast / pad logical f32 params for the kernel.

    Weights -> bf16 (w1 keeps its full 442-row K, no padding needed);
    w4 padded to [H3, OUT_PAD].  Biases stay f32 rows; padded b4 lanes get
    NEG_BIG so softmax masks them.
    """
    w1 = params["w1"].astype(jnp.bfloat16)                          # [442, 512]
    w2 = params["w2"].astype(jnp.bfloat16)
    w3 = params["w3"].astype(jnp.bfloat16)
    w4 = jnp.zeros((H3, OUT_PAD), jnp.bfloat16).at[:, :OUT_SIZE].set(
        params["w4"].astype(jnp.bfloat16))

    b1 = params["b1"].astype(jnp.float32)
    b2 = params["b2"].astype(jnp.float32)
    b3 = params["b3"].astype(jnp.float32)
    b4 = jnp.full((1, OUT_PAD), NEG_BIG, jnp.float32).at[:, :OUT_SIZE].set(
        params["b4"].astype(jnp.float32))

    return dict(w1=w1, b1=b1, w2=w2, b2=b2, w3=w3, b3=b3, w4=w4, b4=b4)


def discard_model_forward(x, kparams, tile_b=None):
    """x: [B, 442] float32.  kparams: output of prepare_params.  Returns [B, 34] f32."""
    B = x.shape[0]
    TB = _choose_tile_b(B) if tile_b is None else tile_b
    num_tiles = pl.cdiv(B, TB)
    B_pad = num_tiles * TB

    x_in = x.astype(jnp.float32)
    if B_pad != B:
        # Only the (small) batch tail is padded; padded rows are sliced off below.
        x_in = jnp.pad(x_in, ((0, B_pad - B), (0, 0)))

    w1, b1 = kparams["w1"], kparams["b1"]
    w2, b2 = kparams["w2"], kparams["b2"]
    w3, b3 = kparams["w3"], kparams["b3"]
    w4, b4 = kparams["w4"], kparams["b4"]

    def resident(shape):
        # Full-array block with a constant index_map: stays in VMEM across grid steps.
        return pl.BlockSpec(shape, lambda i: tuple(0 for _ in shape))

    out = pl.pallas_call(
        _mlp_kernel,
        out_shape=jax.ShapeDtypeStruct((B_pad, OUT_PAD), jnp.float32),
        grid=(num_tiles,),
        in_specs=[
            # f32 activations streamed at full 442-lane width (cast in-kernel).
            pl.BlockSpec((TB, IN_SIZE), lambda i: (i, 0)),
            resident(w1.shape), resident(b1.shape),
            resident(w2.shape), resident(b2.shape),
            resident(w3.shape), resident(b3.shape),
            resident(w4.shape), resident(b4.shape),
        ],
        out_specs=pl.BlockSpec((TB, OUT_PAD), lambda i: (i, 0)),
        compiler_params=pltpu.CompilerParams(
            dimension_semantics=("parallel",),       # megacore sharding on v7x
            vmem_limit_bytes=32 * 1024 * 1024,        # TB=1024 fits v5e's scoped VMEM
        ),
    )(x_in, w1, b1, w2, b2, w3, b3, w4, b4)

    return out[:B, :OUT_SIZE]


def init_params(key):
    """Xavier-normal weights (std = sqrt(2/(fan_in+fan_out))), zero biases —
    mirrors init_weight() in the PyTorch module.  Logical f32 shapes [in, out]."""
    dims = [(IN_SIZE, H1), (H1, H2), (H2, H3), (H3, OUT_SIZE)]
    params = {}
    for i, (fan_in, fan_out) in enumerate(dims, start=1):
        key, sub = jax.random.split(key)
        std = (2.0 / (fan_in + fan_out)) ** 0.5
        params[f"w{i}"] = (std * jax.random.normal(sub, (fan_in, fan_out))).astype(jnp.float32)
        params[f"b{i}"] = jnp.zeros((1, fan_out), dtype=jnp.float32)
    return params


def reference_forward_bf16(x, p):
    """Same math as the kernel (bf16 operands, f32 accumulate) — tight check."""
    def mm(a, w):
        return jnp.dot(a.astype(jnp.bfloat16), w.astype(jnp.bfloat16),
                       preferred_element_type=jnp.float32)
    h = jnp.maximum(mm(x, p["w1"]) + p["b1"], 0.0)
    h = jnp.maximum(mm(h, p["w2"]) + p["b2"], 0.0)
    h = jnp.maximum(mm(h, p["w3"]) + p["b3"], 0.0)
    logits = mm(h, p["w4"]) + p["b4"]
    return jax.nn.softmax(logits, axis=-1)


def reference_forward_f32(x, p):
    """Exact-f32 PyTorch-equivalent forward — loose sanity check."""
    h = jnp.maximum(x @ p["w1"] + p["b1"], 0.0)
    h = jnp.maximum(h @ p["w2"] + p["b2"], 0.0)
    h = jnp.maximum(h @ p["w3"] + p["b3"], 0.0)
    return jax.nn.softmax(h @ p["w4"] + p["b4"], axis=-1)


if __name__ == "__main__":
    key = jax.random.PRNGKey(0)
    pkey, xkey = jax.random.split(key)

    params = init_params(pkey)          # logical f32 params
    kparams = prepare_params(params)    # bf16 weights + f32 biases for the kernel

    B = 8
    x = jax.random.normal(xkey, (B, IN_SIZE), dtype=jnp.float32)

    out = discard_model_forward(x, kparams)
    out = jax.block_until_ready(out)

    assert out.shape == (B, OUT_SIZE)
    # Rows are valid probability distributions (approx reciprocal => loose atol).
    assert jnp.allclose(jnp.sum(out, axis=-1), 1.0, atol=5e-3)
    # Matches a bit-equivalent bf16/f32-accumulate reference.
    ref_bf16 = reference_forward_bf16(x, params)
    assert jnp.allclose(out, ref_bf16, atol=1e-2, rtol=1e-2)
    # Matches the full-f32 PyTorch-equivalent forward up to bf16 weight rounding.
    ref_f32 = reference_forward_f32(x, params)
    assert jnp.allclose(out, ref_f32, atol=3e-2)

    print("KERNEL_OK")
</pallas_src>

<mosaic_0001>
module attributes {stable_mosaic.version = 11 : i64} {
  func.func @_mlp_kernel(%arg0: i32, %arg1: memref<16x442xf32, #tpu.memory_space<vmem>>, %arg2: memref<442x512xbf16, #tpu.memory_space<vmem>>, %arg3: memref<1x512xf32, #tpu.memory_space<vmem>>, %arg4: memref<512x256xbf16, #tpu.memory_space<vmem>>, %arg5: memref<1x256xf32, #tpu.memory_space<vmem>>, %arg6: memref<256x256xbf16, #tpu.memory_space<vmem>>, %arg7: memref<1x256xf32, #tpu.memory_space<vmem>>, %arg8: memref<256x128xbf16, #tpu.memory_space<vmem>>, %arg9: memref<1x128xf32, #tpu.memory_space<vmem>>, %arg10: memref<16x128xf32, #tpu.memory_space<vmem>>) attributes {dimension_semantics = [#tpu.dimension_semantics<parallel>], iteration_bounds = array<i64: 1>, scalar_prefetch = 0 : i64, scratch_operands = 0 : i64, tpu.core_type = #tpu.core_type<tc>, window_params = [{transform_indices = @transform_0, window_bounds = array<i64: 16, 442>}, {pipeline_mode = #tpu.pipeline_mode<synchronous>, transform_indices = @transform_1, window_bounds = array<i64: 442, 512>}, {pipeline_mode = #tpu.pipeline_mode<synchronous>, transform_indices = @transform_2, window_bounds = array<i64: 1, 512>}, {pipeline_mode = #tpu.pipeline_mode<synchronous>, transform_indices = @transform_3, window_bounds = array<i64: 512, 256>}, {pipeline_mode = #tpu.pipeline_mode<synchronous>, transform_indices = @transform_4, window_bounds = array<i64: 1, 256>}, {pipeline_mode = #tpu.pipeline_mode<synchronous>, transform_indices = @transform_5, window_bounds = array<i64: 256, 256>}, {pipeline_mode = #tpu.pipeline_mode<synchronous>, transform_indices = @transform_6, window_bounds = array<i64: 1, 256>}, {pipeline_mode = #tpu.pipeline_mode<synchronous>, transform_indices = @transform_7, window_bounds = array<i64: 256, 128>}, {pipeline_mode = #tpu.pipeline_mode<synchronous>, transform_indices = @transform_8, window_bounds = array<i64: 1, 128>}, {transform_indices = @transform_9, window_bounds = array<i64: 16, 128>}]} {
    %c0 = arith.constant 0 : index
    %c0_0 = arith.constant 0 : index
    %0 = vector.load %arg1[%c0, %c0_0] : memref<16x442xf32, #tpu.memory_space<vmem>>, vector<16x442xf32>
    %1 = arith.truncf %0 : vector<16x442xf32> to vector<16x442xbf16>
    %c0_1 = arith.constant 0 : index
    %c0_2 = arith.constant 0 : index
    %2 = vector.load %arg2[%c0_1, %c0_2] : memref<442x512xbf16, #tpu.memory_space<vmem>>, vector<442x512xbf16>
    %cst = arith.constant dense<0.000000e+00> : vector<16x512xf32>
    %3 = tpu.matmul %1, %2, %cst {dimension_numbers = #tpu.dot_dimension_numbers<[1], [0], [0], [1], [0, 0, 1, 1], [], []>} : vector<16x442xbf16>, vector<442x512xbf16>, vector<16x512xf32> -> vector<16x512xf32>
    %c0_3 = arith.constant 0 : index
    %c0_4 = arith.constant 0 : index
    %4 = vector.load %arg3[%c0_3, %c0_4] : memref<1x512xf32, #tpu.memory_space<vmem>>, vector<1x512xf32>
    %5 = vector.broadcast %4 : vector<1x512xf32> to vector<16x512xf32>
    %6 = arith.addf %3, %5 : vector<16x512xf32>
    %cst_5 = arith.constant 0.000000e+00 : f32
    %7 = vector.broadcast %cst_5 : f32 to vector<16x512xf32>
    %8 = arith.maximumf %6, %7 : vector<16x512xf32>
    %9 = arith.truncf %8 : vector<16x512xf32> to vector<16x512xbf16>
    %c0_6 = arith.constant 0 : index
    %c0_7 = arith.constant 0 : index
    %10 = vector.load %arg4[%c0_6, %c0_7] : memref<512x256xbf16, #tpu.memory_space<vmem>>, vector<512x256xbf16>
    %cst_8 = arith.constant dense<0.000000e+00> : vector<16x256xf32>
    %11 = tpu.matmul %9, %10, %cst_8 {dimension_numbers = #tpu.dot_dimension_numbers<[1], [0], [0], [1], [0, 0, 1, 1], [], []>} : vector<16x512xbf16>, vector<512x256xbf16>, vector<16x256xf32> -> vector<16x256xf32>
    %c0_9 = arith.constant 0 : index
    %c0_10 = arith.constant 0 : index
    %12 = vector.load %arg5[%c0_9, %c0_10] : memref<1x256xf32, #tpu.memory_space<vmem>>, vector<1x256xf32>
    %13 = vector.broadcast %12 : vector<1x256xf32> to vector<16x256xf32>
    %14 = arith.addf %11, %13 : vector<16x256xf32>
    %cst_11 = arith.constant 0.000000e+00 : f32
    %15 = vector.broadcast %cst_11 : f32 to vector<16x256xf32>
    %16 = arith.maximumf %14, %15 : vector<16x256xf32>
    %17 = arith.truncf %16 : vector<16x256xf32> to vector<16x256xbf16>
    %c0_12 = arith.constant 0 : index
    %c0_13 = arith.constant 0 : index
    %18 = vector.load %arg6[%c0_12, %c0_13] : memref<256x256xbf16, #tpu.memory_space<vmem>>, vector<256x256xbf16>
    %cst_14 = arith.constant dense<0.000000e+00> : vector<16x256xf32>
    %19 = tpu.matmul %17, %18, %cst_14 {dimension_numbers = #tpu.dot_dimension_numbers<[1], [0], [0], [1], [0, 0, 1, 1], [], []>} : vector<16x256xbf16>, vector<256x256xbf16>, vector<16x256xf32> -> vector<16x256xf32>
    %c0_15 = arith.constant 0 : index
    %c0_16 = arith.constant 0 : index
    %20 = vector.load %arg7[%c0_15, %c0_16] : memref<1x256xf32, #tpu.memory_space<vmem>>, vector<1x256xf32>
    %21 = vector.broadcast %20 : vector<1x256xf32> to vector<16x256xf32>
    %22 = arith.addf %19, %21 : vector<16x256xf32>
    %cst_17 = arith.constant 0.000000e+00 : f32
    %23 = vector.broadcast %cst_17 : f32 to vector<16x256xf32>
    %24 = arith.maximumf %22, %23 : vector<16x256xf32>
    %25 = arith.truncf %24 : vector<16x256xf32> to vector<16x256xbf16>
    %c0_18 = arith.constant 0 : index
    %c0_19 = arith.constant 0 : index
    %26 = vector.load %arg8[%c0_18, %c0_19] : memref<256x128xbf16, #tpu.memory_space<vmem>>, vector<256x128xbf16>
    %cst_20 = arith.constant dense<0.000000e+00> : vector<16x128xf32>
    %27 = tpu.matmul %25, %26, %cst_20 {dimension_numbers = #tpu.dot_dimension_numbers<[1], [0], [0], [1], [0, 0, 1, 1], [], []>} : vector<16x256xbf16>, vector<256x128xbf16>, vector<16x128xf32> -> vector<16x128xf32>
    %c0_21 = arith.constant 0 : index
    %c0_22 = arith.constant 0 : index
    %28 = vector.load %arg9[%c0_21, %c0_22] : memref<1x128xf32, #tpu.memory_space<vmem>>, vector<1x128xf32>
    %29 = vector.broadcast %28 : vector<1x128xf32> to vector<16x128xf32>
    %30 = arith.addf %27, %29 : vector<16x128xf32>
    %cst_23 = arith.constant dense<0xFF800000> : vector<16xf32>
    %31 = vector.multi_reduction <maximumf>, %30, %cst_23 [1] : vector<16x128xf32> to vector<16xf32>
    %32 = vector.shape_cast %31 : vector<16xf32> to vector<16x1xf32>
    %33 = vector.broadcast %32 : vector<16x1xf32> to vector<16x128xf32>
    %34 = arith.subf %30, %33 : vector<16x128xf32>
    %35 = math.exp %34 : vector<16x128xf32>
    %cst_24 = arith.constant dense<0.000000e+00> : vector<16xf32>
    %36 = vector.multi_reduction <add>, %35, %cst_24 [1] : vector<16x128xf32> to vector<16xf32>
    %37 = vector.shape_cast %36 : vector<16xf32> to vector<16x1xf32>
    %38 = tpu.reciprocal %37 {approx = true} : vector<16x1xf32> -> vector<16x1xf32>
    %39 = vector.broadcast %38 : vector<16x1xf32> to vector<16x128xf32>
    %40 = arith.mulf %35, %39 : vector<16x128xf32>
    %c0_25 = arith.constant 0 : index
    %c0_26 = arith.constant 0 : index
    %41 = vector.load %arg10[%c0_25, %c0_26] : memref<16x128xf32, #tpu.memory_space<vmem>>, vector<16x128xf32>
    tpu.vector_store %arg10[%c0_25, %c0_26], %40 {strides = array<i32>} : memref<16x128xf32, #tpu.memory_space<vmem>>, vector<16x128xf32>,
    return
  }
  func.func @transform_0(%arg0: i32) -> (i32, i32) {
    %c0_i32 = arith.constant 0 : i32
    %c0_i32_0 = arith.constant 0 : i32
    return %arg0, %c0_i32 : i32, i32
  }
  func.func @transform_1(%arg0: i32) -> (i32, i32) {
    %c0_i32 = arith.constant 0 : i32
    %c0_i32_0 = arith.constant 0 : i32
    %c0_i32_1 = arith.constant 0 : i32
    return %c0_i32, %c0_i32_0 : i32, i32
  }
  func.func @transform_2(%arg0: i32) -> (i32, i32) {
    %c0_i32 = arith.constant 0 : i32
    %c0_i32_0 = arith.constant 0 : i32
    %c0_i32_1 = arith.constant 0 : i32
    return %c0_i32, %c0_i32_0 : i32, i32
  }
  func.func @transform_3(%arg0: i32) -> (i32, i32) {
    %c0_i32 = arith.constant 0 : i32
    %c0_i32_0 = arith.constant 0 : i32
    %c0_i32_1 = arith.constant 0 : i32
    return %c0_i32, %c0_i32_0 : i32, i32
  }
  func.func @transform_4(%arg0: i32) -> (i32, i32) {
    %c0_i32 = arith.constant 0 : i32
    %c0_i32_0 = arith.constant 0 : i32
    %c0_i32_1 = arith.constant 0 : i32
    return %c0_i32, %c0_i32_0 : i32, i32
  }
  func.func @transform_5(%arg0: i32) -> (i32, i32) {
    %c0_i32 = arith.constant 0 : i32
    %c0_i32_0 = arith.constant 0 : i32
    %c0_i32_1 = arith.constant 0 : i32
    return %c0_i32, %c0_i32_0 : i32, i32
  }
  func.func @transform_6(%arg0: i32) -> (i32, i32) {
    %c0_i32 = arith.constant 0 : i32
    %c0_i32_0 = arith.constant 0 : i32
    %c0_i32_1 = arith.constant 0 : i32
    return %c0_i32, %c0_i32_0 : i32, i32
  }
  func.func @transform_7(%arg0: i32) -> (i32, i32) {
    %c0_i32 = arith.constant 0 : i32
    %c0_i32_0 = arith.constant 0 : i32
    %c0_i32_1 = arith.constant 0 : i32
    return %c0_i32, %c0_i32_0 : i32, i32
  }
  func.func @transform_8(%arg0: i32) -> (i32, i32) {
    %c0_i32 = arith.constant 0 : i32
    %c0_i32_0 = arith.constant 0 : i32
    %c0_i32_1 = arith.constant 0 : i32
    return %c0_i32, %c0_i32_0 : i32, i32
  }
  func.func @transform_9(%arg0: i32) -> (i32, i32) {
    %c0_i32 = arith.constant 0 : i32
    %c0_i32_0 = arith.constant 0 : i32
    return %arg0, %c0_i32 : i32, i32
  }
}

</mosaic_0001>

<llo_original>
// kernel: tpu_custom_call.1
$region0: #{tpu_custom_call.1}
  #allocation0 [shape = 'u32[]', space=smem, size = 0x4, offset = 0x4, fixed_abs, tag = 'smem constant byte address 0x4 - core index']
  #allocation1 [shape = 'u32[144,128]{1,0:T(1,128)}', space=vmem, size = 0x12000, scoped, tag = 'internal scratch']
  %s0 = inlined_call_operand.hbm [shape: f32[16,442], index: 0, kind: input, shape index: {}]
  %s1 = inlined_call_operand.hbm [shape: bf16[442,512], index: 1, kind: input, shape index: {}]
  %s2 = inlined_call_operand.vmem [shape: f32[1,512], index: 2, kind: input, shape index: {}]
  %s3 = inlined_call_operand.hbm [shape: bf16[512,256], index: 3, kind: input, shape index: {}]
  %s4 = inlined_call_operand.vmem [shape: f32[1,256], index: 4, kind: input, shape index: {}]
  %s5 = inlined_call_operand.hbm [shape: bf16[256,256], index: 5, kind: input, shape index: {}]
  %s6 = inlined_call_operand.vmem [shape: f32[1,256], index: 6, kind: input, shape index: {}]
  %s7 = inlined_call_operand.hbm [shape: bf16[256,128], index: 7, kind: input, shape index: {}]
  %s8 = inlined_call_operand.vmem [shape: f32[1,128], index: 8, kind: input, shape index: {}]
  %s9 = inlined_call_operand.hbm [shape: f32[16,128], index: 9, kind: output, shape index: {}]
  %s10 = sld [smem:[#allocation0]]
  $region66: #{tpu_custom_call.1} parent=0
    _
  %s12 = ssub.s32 1, %s10
  %s13 = scalar_select 0, %s12, %s10
  $region1: #{tpu_custom_call.1} parent=0
    #allocation2 [shape = 'u8[32768]{0}', space=vmem, size = 0x8000, scoped, tag = 'input window, operand 0, single buffered']
    #allocation3 [shape = 's32[1]{0}', space=sflag, size = 0x4, scoped, tag = 'scoped memory for tpu_custom_call.1']
    #allocation4 [shape = 's32[1]{0}', space=sflag, size = 0x4, scoped, tag = 'scoped memory for tpu_custom_call.1']
    #allocation5 [shape = 'u8[458752]{0}', space=vmem, size = 0x70000, scoped, tag = 'input window, operand 1, single buffered']
    #allocation6 [shape = 's32[1]{0}', space=sflag, size = 0x4, scoped, tag = 'scoped memory for tpu_custom_call.1']
    #allocation7 [shape = 'u8[262144]{0}', space=vmem, size = 0x40000, scoped, tag = 'input window, operand 3, single buffered']
    #allocation8 [shape = 'u8[131072]{0}', space=vmem, size = 0x20000, scoped, tag = 'input window, operand 5, single buffered']
    #allocation9 [shape = 's32[1]{0}', space=sflag, size = 0x4, scoped, tag = 'scoped memory for tpu_custom_call.1']
    #allocation10 [shape = 'u8[65536]{0}', space=vmem, size = 0x10000, scoped, tag = 'input window, operand 7, single buffered']
    #allocation11 [shape = 'u8[8192]{0}', space=vmem, size = 0x2000, scoped, tag = 'output window, operand 0, single buffered']
    %14 = vsyncpa [#allocation3], 0
    %15 = vsyncpa [#allocation6], 0
    %16 = vsyncpa [#allocation9], 0
    %17 = vsyncpa [#allocation4], 0
    // Predicated region
    $region2: #{tpu_custom_call.1} parent=1 // pred_check
      _
    $region3: #{tpu_custom_call.1} parent=1 // pred_check_branch
      %19 = sbr.rel (0) target = $region5
    $region4: #{tpu_custom_call.1} parent=1 // pred_region
      %s21 = ssub.s32 1024, 1024
      %22 = vsyncadd [#allocation3], %s21
      %s23 = sshll.u32 [#allocation2], 4
      %s24 = int_to_ptr.vmem [resolvable:$true] %s23
      %29 = dma.hbm_to_vmem [thread:$0]  %s0, 1024, %s24, [#allocation3], 512, 512, 32
    $region5: #{tpu_custom_call.1} parent=1 // pred_fallthru
      _
    // Predicated region
    $region6: #{tpu_custom_call.1} parent=1 // pred_check
      _
    $region7: #{tpu_custom_call.1} parent=1 // pred_check_branch
      %31 = sbr.rel (0) target = $region9
    $region8: #{tpu_custom_call.1} parent=1 // pred_region
      %s33 = ssub.s32 14336, 14336
      %34 = vsyncadd [#allocation6], %s33
      %s35 = sshll.u32 [#allocation5], 4
      %s36 = int_to_ptr.vmem [resolvable:$true] %s35
      %41 = dma.hbm_to_vmem [thread:$0]  %s1, 14336, %s36, [#allocation6], 256, 256, 16
    $region9: #{tpu_custom_call.1} parent=1 // pred_fallthru
      _
    // Predicated region
    $region10: #{tpu_custom_call.1} parent=1 // pred_check
      _
    $region11: #{tpu_custom_call.1} parent=1 // pred_check_branch
      %43 = sbr.rel (0) target = $region13
    $region12: #{tpu_custom_call.1} parent=1 // pred_region
      _
    $region13: #{tpu_custom_call.1} parent=1 // pred_fallthru
      _
    // Predicated region
    $region14: #{tpu_custom_call.1} parent=1 // pred_check
      _
    $region15: #{tpu_custom_call.1} parent=1 // pred_check_branch
      %45 = sbr.rel (0) target = $region17
    $region16: #{tpu_custom_call.1} parent=1 // pred_region
      %s47 = ssub.s32 8192, 8192
      %48 = vsyncadd [#allocation6], %s47
      %s49 = sshll.u32 [#allocation7], 4
      %s50 = int_to_ptr.vmem [resolvable:$true] %s49
      %55 = dma.hbm_to_vmem [thread:$0]  %s3, 8192, %s50, [#allocation6], 128, 128, 8
    $region17: #{tpu_custom_call.1} parent=1 // pred_fallthru
      _
    // Predicated region
    $region18: #{tpu_custom_call.1} parent=1 // pred_check
      _
    $region19: #{tpu_custom_call.1} parent=1 // pred_check_branch
      %57 = sbr.rel (0) target = $region21
    $region20: #{tpu_custom_call.1} parent=1 // pred_region
      _
    $region21: #{tpu_custom_call.1} parent=1 // pred_fallthru
      _
    // Predicated region
    $region22: #{tpu_custom_call.1} parent=1 // pred_check
      _
    $region23: #{tpu_custom_call.1} parent=1 // pred_check_branch
      %59 = sbr.rel (0) target = $region25
    $region24: #{tpu_custom_call.1} parent=1 // pred_region
      %s61 = ssub.s32 4096, 4096
      %62 = vsyncadd [#allocation9], %s61
      %s63 = sshll.u32 [#allocation8], 4
      %s64 = int_to_ptr.vmem [resolvable:$true] %s63
      %69 = dma.hbm_to_vmem [thread:$0]  %s5, 4096, %s64, [#allocation9], 128, 128, 8
    $region25: #{tpu_custom_call.1} parent=1 // pred_fallthru
      _
    // Predicated region
    $region26: #{tpu_custom_call.1} parent=1 // pred_check
      _
    $region27: #{tpu_custom_call.1} parent=1 // pred_check_branch
      %71 = sbr.rel (0) target = $region29
    $region28: #{tpu_custom_call.1} parent=1 // pred_region
      _
    $region29: #{tpu_custom_call.1} parent=1 // pred_fallthru
      _
    // Predicated region
    $region30: #{tpu_custom_call.1} parent=1 // pred_check
      _
    $region31: #{tpu_custom_call.1} parent=1 // pred_check_branch
      %73 = sbr.rel (0) target = $region33
    $region32: #{tpu_custom_call.1} parent=1 // pred_region
      %s75 = ssub.s32 2048, 2048
      %76 = vsyncadd [#allocation9], %s75
      %s77 = sshll.u32 [#allocation10], 4
      %s78 = int_to_ptr.vmem [resolvable:$true] %s77
      %83 = dma.hbm_to_vmem [thread:$0]  %s7, 2048, %s78, [#allocation9], 64, 64, 4
    $region33: #{tpu_custom_call.1} parent=1 // pred_fallthru
      _
    // Predicated region
    $region34: #{tpu_custom_call.1} parent=1 // pred_check
      _
    $region35: #{tpu_custom_call.1} parent=1 // pred_check_branch
      %85 = sbr.rel (0) target = $region37
    $region36: #{tpu_custom_call.1} parent=1 // pred_region
      _
    $region37: #{tpu_custom_call.1} parent=1 // pred_fallthru
      _
    // Predicated region
    $region38: #{tpu_custom_call.1} parent=1 // pred_check
      _
    $region39: #{tpu_custom_call.1} parent=1 // pred_check_branch
      %87 = sbr.rel (0) target = $region41
    $region40: #{tpu_custom_call.1} parent=1 // pred_region
      %88 = dma.done [#allocation3], 1024
    $region41: #{tpu_custom_call.1} parent=1 // pred_fallthru
      _
    // Predicated region
    $region42: #{tpu_custom_call.1} parent=1 // pred_check
      _
    $region43: #{tpu_custom_call.1} parent=1 // pred_check_branch
      %90 = sbr.rel (0) target = $region45
    $region44: #{tpu_custom_call.1} parent=1 // pred_region
      %91 = dma.done [#allocation6], 14336
    $region45: #{tpu_custom_call.1} parent=1 // pred_fallthru
      _
    // Predicated region
    $region46: #{tpu_custom_call.1} parent=1 // pred_check
      _
    $region47: #{tpu_custom_call.1} parent=1 // pred_check_branch
      %93 = sbr.rel (0) target = $region49
    $region48: #{tpu_custom_call.1} parent=1 // pred_region
      %94 = dma.done [#allocation6], 8192
    $region49: #{tpu_custom_call.1} parent=1 // pred_fallthru
      _
    // Predicated region
    $region50: #{tpu_custom_call.1} parent=1 // pred_check
      _
    $region51: #{tpu_custom_call.1} parent=1 // pred_check_branch
      %96 = sbr.rel (0) target = $region53
    $region52: #{tpu_custom_call.1} parent=1 // pred_region
      %97 = dma.done [#allocation9], 4096
    $region53: #{tpu_custom_call.1} parent=1 // pred_fallthru
      _
    // Predicated region
    $region54: #{tpu_custom_call.1} parent=1 // pred_check
      _
    $region55: #{tpu_custom_call.1} parent=1 // pred_check_branch
      %99 = sbr.rel (0) target = $region57
    $region56: #{tpu_custom_call.1} parent=1 // pred_region
      %100 = dma.done [#allocation9], 2048
    $region57: #{tpu_custom_call.1} parent=1 // pred_fallthru
      _
    %v102 = vld [vmem:[#allocation2] sm:$0xff]
    %v103 = vld [vmem:[#allocation2 + $0x8] sm:$0xff]
    %v104 = vld [vmem:[#allocation2 + $0x10] sm:$0xff]
    %v105 = vld [vmem:[#allocation2 + $0x18] sm:$0xff]
    %v106 = vld [vmem:[#allocation2 + $0x20] sm:$0xff]
    %v107 = vld [vmem:[#allocation2 + $0x28] sm:$0xff]
    %v108 = vld [vmem:[#allocation2 + $0x30] sm:$0xff]
    %v109 = vld [vmem:[#allocation2 + $0x38] sm:$0xff]
    %v110 = vpack.c.bf16 %v106, %v102
    %v111 = vpack.c.bf16 %v107, %v103
    %v112 = vpack.c.bf16 %v108, %v104
    %v113 = vpack.c.bf16 %v109, %v105
    %v114 = vld [vmem:[#allocation5] sm:$0xff]
    %v115 = vld [vmem:[#allocation5 + $0x8] sm:$0xff]
    %v116 = vld [vmem:[#allocation5 + $0x10] sm:$0xff]
    %v117 = vld [vmem:[#allocation5 + $0x18] sm:$0xff]
    %v118 = vld [vmem:[#allocation5 + $0x20] sm:$0xff]
    %v119 = vld [vmem:[#allocation5 + $0x28] sm:$0xff]
    %v120 = vld [vmem:[#allocation5 + $0x30] sm:$0xff]
    %v121 = vld [vmem:[#allocation5 + $0x38] sm:$0xff]
    %v122 = vld [vmem:[#allocation5 + $0x40] sm:$0xff]
    %v123 = vld [vmem:[#allocation5 + $0x48] sm:$0xff]
    %v124 = vld [vmem:[#allocation5 + $0x50] sm:$0xff]
    %v125 = vld [vmem:[#allocation5 + $0x58] sm:$0xff]
    %v126 = vld [vmem:[#allocation5 + $0x60] sm:$0xff]
    %v127 = vld [vmem:[#allocation5 + $0x68] sm:$0xff]
    %v128 = vld [vmem:[#allocation5 + $0x70] sm:$0xff]
    %v129 = vld [vmem:[#allocation5 + $0x78] sm:$0xff]
    %v130 = vld [vmem:[#allocation5 + $0x80] sm:$0xff]
    %v131 = vld [vmem:[#allocation5 + $0x88] sm:$0xff]
    %v132 = vld [vmem:[#allocation5 + $0x90] sm:$0xff]
    %v133 = vld [vmem:[#allocation5 + $0x98] sm:$0xff]
    %v134 = vld [vmem:[#allocation5 + $0xa0] sm:$0xff]
    %v135 = vld [vmem:[#allocation5 + $0xa8] sm:$0xff]
    %v136 = vld [vmem:[#allocation5 + $0xb0] sm:$0xff]
    %v137 = vld [vmem:[#allocation5 + $0xb8] sm:$0xff]
    %v138 = vld [vmem:[#allocation5 + $0xc0] sm:$0xff]
    %v139 = vld [vmem:[#allocation5 + $0xc8] sm:$0xff]
    %v140 = vld [vmem:[#allocation5 + $0xd0] sm:$0xff]
    %v141 = vld [vmem:[#allocation5 + $0xd8] sm:$0xff]
    %v142 = vld [vmem:[#allocation5 + $0xe0] sm:$0xff]
    %v143 = vld [vmem:[#allocation5 + $0xe8] sm:$0xff]
    %v144 = vld [vmem:[#allocation5 + $0xf0] sm:$0xff]
    %v145 = vld [vmem:[#allocation5 + $0xf8] sm:$0xff]
    %v146 = vld [vmem:[#allocation5 + $0x100] sm:$0xff]
    %v147 = vld [vmem:[#allocation5 + $0x108] sm:$0xff]
    %v148 = vld [vmem:[#allocation5 + $0x110] sm:$0xff]
    %v149 = vld [vmem:[#allocation5 + $0x118] sm:$0xff]
    %v150 = vld [vmem:[#allocation5 + $0x120] sm:$0xff]
    %v151 = vld [vmem:[#allocation5 + $0x128] sm:$0xff]
    %v152 = vld [vmem:[#allocation5 + $0x130] sm:$0xff]
    %v153 = vld [vmem:[#allocation5 + $0x138] sm:$0xff]
    %v154 = vld [vmem:[#allocation5 + $0x140] sm:$0xff]
    %v155 = vld [vmem:[#allocation5 + $0x148] sm:$0xff]
    %v156 = vld [vmem:[#allocation5 + $0x150] sm:$0xff]
    %v157 = vld [vmem:[#allocation5 + $0x158] sm:$0xff]
    %v158 = vld [vmem:[#allocation5 + $0x160] sm:$0xff]
    %v159 = vld [vmem:[#allocation5 + $0x168] sm:$0xff]
    %v160 = vld [vmem:[#allocation5 + $0x170] sm:$0xff]
    %v161 = vld [vmem:[#allocation5 + $0x178] sm:$0xff]
    %v162 = vld [vmem:[#allocation5 + $0x180] sm:$0xff]
    %v163 = vld [vmem:[#allocation5 + $0x188] sm:$0xff]
    %v164 = vld [vmem:[#allocation5 + $0x190] sm:$0xff]
    %v165 = vld [vmem:[#allocation5 + $0x198] sm:$0xff]
    %v166 = vld [vmem:[#allocation5 + $0x1a0] sm:$0xff]
    %v167 = vld [vmem:[#allocation5 + $0x1a8] sm:$0xff]
    %v168 = vld [vmem:[#allocation5 + $0x1b0] sm:$0xff]
    %v169 = vld [vmem:[#allocation5 + $0x1b8] sm:$0xff]
    %v170 = vld [vmem:[#allocation5 + $0x1c0] sm:$0xff]
    %v171 = vld [vmem:[#allocation5 + $0x1c8] sm:$0xff]
    %v172 = vld [vmem:[#allocation5 + $0x1d0] sm:$0xff]
    %v173 = vld [vmem:[#allocation5 + $0x1d8] sm:$0xff]
    %v174 = vld [vmem:[#allocation5 + $0x1e0] sm:$0xff]
    %v175 = vld [vmem:[#allocation5 + $0x1e8] sm:$0xff]
    %v176 = vld [vmem:[#allocation5 + $0x1f0] sm:$0xff]
    %v177 = vld [vmem:[#allocation5 + $0x1f8] sm:$0xff]
    %v178 = vld [vmem:[#allocation5 + $0x200] sm:$0xff]
    %v179 = vld [vmem:[#allocation5 + $0x208] sm:$0xff]
    %v180 = vld [vmem:[#allocation5 + $0x210] sm:$0xff]
    %v181 = vld [vmem:[#allocation5 + $0x218] sm:$0xff]
    %v182 = vld [vmem:[#allocation5 + $0x220] sm:$0xff]
    %v183 = vld [vmem:[#allocation5 + $0x228] sm:$0xff]
    %v184 = vld [vmem:[#allocation5 + $0x230] sm:$0xff]
    %v185 = vld [vmem:[#allocation5 + $0x238] sm:$0xff]
    %v186 = vld [vmem:[#allocation5 + $0x240] sm:$0xff]
    %v187 = vld [vmem:[#allocation5 + $0x248] sm:$0xff]
    %v188 = vld [vmem:[#allocation5 + $0x250] sm:$0xff]
    %v189 = vld [vmem:[#allocation5 + $0x258] sm:$0xff]
    %v190 = vld [vmem:[#allocation5 + $0x260] sm:$0xff]
    %v191 = vld [vmem:[#allocation5 + $0x268] sm:$0xff]
    %v192 = vld [vmem:[#allocation5 + $0x270] sm:$0xff]
    %v193 = vld [vmem:[#allocation5 + $0x278] sm:$0xff]
    %v194 = vld [vmem:[#allocation5 + $0x280] sm:$0xff]
    %v195 = vld [vmem:[#allocation5 + $0x288] sm:$0xff]
    %v196 = vld [vmem:[#allocation5 + $0x290] sm:$0xff]
    %v197 = vld [vmem:[#allocation5 + $0x298] sm:$0xff]
    %v198 = vld [vmem:[#allocation5 + $0x2a0] sm:$0xff]
    %v199 = vld [vmem:[#allocation5 + $0x2a8] sm:$0xff]
    %v200 = vld [vmem:[#allocation5 + $0x2b0] sm:$0xff]
    %v201 = vld [vmem:[#allocation5 + $0x2b8] sm:$0xff]
    %v202 = vld [vmem:[#allocation5 + $0x2c0] sm:$0xff]
    %v203 = vld [vmem:[#allocation5 + $0x2c8] sm:$0xff]
    %v204 = vld [vmem:[#allocation5 + $0x2d0] sm:$0xff]
    %v205 = vld [vmem:[#allocation5 + $0x2d8] sm:$0xff]
    %v206 = vld [vmem:[#allocation5 + $0x2e0] sm:$0xff]
    %v207 = vld [vmem:[#allocation5 + $0x2e8] sm:$0xff]
    %v208 = vld [vmem:[#allocation5 + $0x2f0] sm:$0xff]
    %v209 = vld [vmem:[#allocation5 + $0x2f8] sm:$0xff]
    %v210 = vld [vmem:[#allocation5 + $0x300] sm:$0xff]
    %v211 = vld [vmem:[#allocation5 + $0x308] sm:$0xff]
    %v212 = vld [vmem:[#allocation5 + $0x310] sm:$0xff]
    %v213 = vld [vmem:[#allocation5 + $0x318] sm:$0xff]
    %v214 = vld [vmem:[#allocation5 + $0x320] sm:$0xff]
    %v215 = vld [vmem:[#allocation5 + $0x328] sm:$0xff]
    %v216 = vld [vmem:[#allocation5 + $0x330] sm:$0xff]
    %v217 = vld [vmem:[#allocation5 + $0x338] sm:$0xff]
    %v218 = vld [vmem:[#allocation5 + $0x340] sm:$0xff]
    %v219 = vld [vmem:[#allocation5 + $0x348] sm:$0xff]
    %v220 = vld [vmem:[#allocation5 + $0x350] sm:$0xff]
    %v221 = vld [vmem:[#allocation5 + $0x358] sm:$0xff]
    %v222 = vld [vmem:[#allocation5 + $0x360] sm:$0xff]
    %v223 = vld [vmem:[#allocation5 + $0x368] sm:$0xff]
    %v224 = vld [vmem:[#allocation5 + $0x370] sm:$0x11]
    %v225 = vld [vmem:[#allocation5 + $0x378] sm:$0x11]
    %v226 = vld [vmem:[%s2] sm:$0xf]
    %v228 = vlaneseq
    %v229 = vshrl.u32 %v228, 7
    %v230 = vsub.s32 0, %v229
    %v231 = vrot.slane %v226, %v230
    %v232 = vlaneseq
    %v233 = vshrl.u32 %v232, 7
    %v234 = vsub.s32 1, %v233
    %v235 = vrot.slane %v226, %v234
    %v236 = vlaneseq
    %v237 = vshrl.u32 %v236, 7
    %v238 = vsub.s32 2, %v237
    %v239 = vrot.slane %v226, %v238
    %v240 = vlaneseq
    %v241 = vshrl.u32 %v240, 7
    %v242 = vsub.s32 3, %v241
    %v243 = vrot.slane %v226, %v242
    %v360 = vunpack.c.l.b16 %v114
    %v361 = vunpack.c.h.b16 %v114
    %v362 = vunpack.c.l.b16 %v115
    %v363 = vunpack.c.h.b16 %v115
    %v364 = vunpack.c.l.b16 %v116
    %v365 = vunpack.c.h.b16 %v116
    %v366 = vunpack.c.l.b16 %v117
    %v367 = vunpack.c.h.b16 %v117
    %v368 = vunpack.c.l.b16 %v118
    %v369 = vunpack.c.h.b16 %v118
    %v370 = vunpack.c.l.b16 %v119
    %v371 = vunpack.c.h.b16 %v119
    %v372 = vunpack.c.l.b16 %v120
    %v373 = vunpack.c.h.b16 %v120
    %v374 = vunpack.c.l.b16 %v121
    %v375 = vunpack.c.h.b16 %v121
    %v376 = vunpack.c.l.b16 %v122
    %v377 = vunpack.c.h.b16 %v122
    %v378 = vunpack.c.l.b16 %v123
    %v379 = vunpack.c.h.b16 %v123
    %v380 = vunpack.c.l.b16 %v124
    %v381 = vunpack.c.h.b16 %v124
    %v382 = vunpack.c.l.b16 %v125
    %v383 = vunpack.c.h.b16 %v125
    %v384 = vunpack.c.l.b16 %v126
    %v385 = vunpack.c.h.b16 %v126
    %v386 = vunpack.c.l.b16 %v127
    %v387 = vunpack.c.h.b16 %v127
    %v388 = vunpack.c.l.b16 %v128
    %v389 = vunpack.c.h.b16 %v128
    %v390 = vunpack.c.l.b16 %v129
    %v391 = vunpack.c.h.b16 %v129
    %v392 = vunpack.c.l.b16 %v130
    %v393 = vunpack.c.h.b16 %v130
    %v394 = vunpack.c.l.b16 %v131
    %v395 = vunpack.c.h.b16 %v131
    %v396 = vunpack.c.l.b16 %v132
    %v397 = vunpack.c.h.b16 %v132
    %v398 = vunpack.c.l.b16 %v133
    %v399 = vunpack.c.h.b16 %v133
    %v400 = vunpack.c.l.b16 %v134
    %v401 = vunpack.c.h.b16 %v134
    %v402 = vunpack.c.l.b16 %v135
    %v403 = vunpack.c.h.b16 %v135
    %v404 = vunpack.c.l.b16 %v136
    %v405 = vunpack.c.h.b16 %v136
    %v406 = vunpack.c.l.b16 %v137
    %v407 = vunpack.c.h.b16 %v137
    %v408 = vunpack.c.l.b16 %v138
    %v409 = vunpack.c.h.b16 %v138
    %v410 = vunpack.c.l.b16 %v139
    %v411 = vunpack.c.h.b16 %v139
    %v412 = vunpack.c.l.b16 %v140
    %v413 = vunpack.c.h.b16 %v140
    %v414 = vunpack.c.l.b16 %v141
    %v415 = vunpack.c.h.b16 %v141
    %v416 = vunpack.c.l.b16 %v142
    %v417 = vunpack.c.h.b16 %v142
    %v418 = vunpack.c.l.b16 %v143
    %v419 = vunpack.c.h.b16 %v143
    %v420 = vunpack.c.l.b16 %v144
    %v421 = vunpack.c.h.b16 %v144
    %v422 = vunpack.c.l.b16 %v145
    %v423 = vunpack.c.h.b16 %v145
    %v424 = vunpack.c.l.b16 %v146
    %v425 = vunpack.c.h.b16 %v146
    %v426 = vunpack.c.l.b16 %v147
    %v427 = vunpack.c.h.b16 %v147
    %v428 = vunpack.c.l.b16 %v148
    %v429 = vunpack.c.h.b16 %v148
    %v430 = vunpack.c.l.b16 %v149
    %v431 = vunpack.c.h.b16 %v149
    %v432 = vunpack.c.l.b16 %v150
    %v433 = vunpack.c.h.b16 %v150
    %v434 = vunpack.c.l.b16 %v151
    %v435 = vunpack.c.h.b16 %v151
    %v436 = vunpack.c.l.b16 %v152
    %v437 = vunpack.c.h.b16 %v152
    %v438 = vunpack.c.l.b16 %v153
    %v439 = vunpack.c.h.b16 %v153
    %v440 = vunpack.c.l.b16 %v154
    %v441 = vunpack.c.h.b16 %v154
    %v442 = vunpack.c.l.b16 %v155
    %v443 = vunpack.c.h.b16 %v155
    %v444 = vunpack.c.l.b16 %v156
    %v445 = vunpack.c.h.b16 %v156
    %v446 = vunpack.c.l.b16 %v157
    %v447 = vunpack.c.h.b16 %v157
    %v448 = vunpack.c.l.b16 %v158
    %v449 = vunpack.c.h.b16 %v158
    %v450 = vunpack.c.l.b16 %v159
    %v451 = vunpack.c.h.b16 %v159
    %v452 = vunpack.c.l.b16 %v160
    %v453 = vunpack.c.h.b16 %v160
    %v454 = vunpack.c.l.b16 %v161
    %v455 = vunpack.c.h.b16 %v161
    %v456 = vunpack.c.l.b16 %v162
    %v457 = vunpack.c.h.b16 %v162
    %v458 = vunpack.c.l.b16 %v163
    %v459 = vunpack.c.h.b16 %v163
    %v460 = vunpack.c.l.b16 %v164
    %v461 = vunpack.c.h.b16 %v164
    %v462 = vunpack.c.l.b16 %v165
    %v463 = vunpack.c.h.b16 %v165
    %v464 = vunpack.c.l.b16 %v166
    %v465 = vunpack.c.h.b16 %v166
    %v466 = vunpack.c.l.b16 %v167
    %v467 = vunpack.c.h.b16 %v167
    %v468 = vunpack.c.l.b16 %v168
    %v469 = vunpack.c.h.b16 %v168
    %v470 = vunpack.c.l.b16 %v169
    %v471 = vunpack.c.h.b16 %v169
    %v472 = vunpack.c.l.b16 %v170
    %v473 = vunpack.c.h.b16 %v170
    %v474 = vunpack.c.l.b16 %v171
    %v475 = vunpack.c.h.b16 %v171
    %v476 = vunpack.c.l.b16 %v172
    %v477 = vunpack.c.h.b16 %v172
    %v478 = vunpack.c.l.b16 %v173
    %v479 = vunpack.c.h.b16 %v173
    %v480 = vunpack.c.l.b16 %v174
    %v481 = vunpack.c.h.b16 %v174
    %v482 = vunpack.c.l.b16 %v175
    %v483 = vunpack.c.h.b16 %v175
    %v484 = vunpack.c.l.b16 %v176
    %v485 = vunpack.c.h.b16 %v176
    %v486 = vunpack.c.l.b16 %v177
    %v487 = vunpack.c.h.b16 %v177
    %v488 = vunpack.c.l.b16 %v178
    %v489 = vunpack.c.h.b16 %v178
    %v490 = vunpack.c.l.b16 %v179
    %v491 = vunpack.c.h.b16 %v179
    %v492 = vunpack.c.l.b16 %v180
    %v493 = vunpack.c.h.b16 %v180
    %v494 = vunpack.c.l.b16 %v181
    %v495 = vunpack.c.h.b16 %v181
    %v496 = vunpack.c.l.b16 %v182
    %v497 = vunpack.c.h.b16 %v182
    %v498 = vunpack.c.l.b16 %v183
    %v499 = vunpack.c.h.b16 %v183
    %v500 = vunpack.c.l.b16 %v184
    %v501 = vunpack.c.h.b16 %v184
    %v502 = vunpack.c.l.b16 %v185
    %v503 = vunpack.c.h.b16 %v185
    %v504 = vunpack.c.l.b16 %v186
    %v505 = vunpack.c.h.b16 %v186
    %v506 = vunpack.c.l.b16 %v187
    %v507 = vunpack.c.h.b16 %v187
    %v508 = vunpack.c.l.b16 %v188
    %v509 = vunpack.c.h.b16 %v188
    %v510 = vunpack.c.l.b16 %v189
    %v511 = vunpack.c.h.b16 %v189
    %v512 = vunpack.c.l.b16 %v190
    %v513 = vunpack.c.h.b16 %v190
    %v514 = vunpack.c.l.b16 %v191
    %v515 = vunpack.c.h.b16 %v191
    %v516 = vunpack.c.l.b16 %v192
    %v517 = vunpack.c.h.b16 %v192
    %v518 = vunpack.c.l.b16 %v193
    %v519 = vunpack.c.h.b16 %v193
    %v520 = vunpack.c.l.b16 %v194
    %v521 = vunpack.c.h.b16 %v194
    %v522 = vunpack.c.l.b16 %v195
    %v523 = vunpack.c.h.b16 %v195
    %v524 = vunpack.c.l.b16 %v196
    %v525 = vunpack.c.h.b16 %v196
    %v526 = vunpack.c.l.b16 %v197
    %v527 = vunpack.c.h.b16 %v197
    %v528 = vunpack.c.l.b16 %v198
    %v529 = vunpack.c.h.b16 %v198
    %v530 = vunpack.c.l.b16 %v199
    %v531 = vunpack.c.h.b16 %v199
    %v532 = vunpack.c.l.b16 %v200
    %v533 = vunpack.c.h.b16 %v200
    %v534 = vunpack.c.l.b16 %v201
    %v535 = vunpack.c.h.b16 %v201
    %v536 = vunpack.c.l.b16 %v202
    %v537 = vunpack.c.h.b16 %v202
    %v538 = vunpack.c.l.b16 %v203
    %v539 = vunpack.c.h.b16 %v203
    %v540 = vunpack.c.l.b16 %v204
    %v541 = vunpack.c.h.b16 %v204
    %v542 = vunpack.c.l.b16 %v205
    %v543 = vunpack.c.h.b16 %v205
    %v544 = vunpack.c.l.b16 %v206
    %v545 = vunpack.c.h.b16 %v206
    %v546 = vunpack.c.l.b16 %v207
    %v547 = vunpack.c.h.b16 %v207
    %v548 = vunpack.c.l.b16 %v208
    %v549 = vunpack.c.h.b16 %v208
    %v550 = vunpack.c.l.b16 %v209
    %v551 = vunpack.c.h.b16 %v209
    %v552 = vunpack.c.l.b16 %v210
    %v553 = vunpack.c.h.b16 %v210
    %v554 = vunpack.c.l.b16 %v211
    %v555 = vunpack.c.h.b16 %v211
    %v556 = vunpack.c.l.b16 %v212
    %v557 = vunpack.c.h.b16 %v212
    %v558 = vunpack.c.l.b16 %v213
    %v559 = vunpack.c.h.b16 %v213
    %v560 = vunpack.c.l.b16 %v214
    %v561 = vunpack.c.h.b16 %v214
    %v562 = vunpack.c.l.b16 %v215
    %v563 = vunpack.c.h.b16 %v215
    %v564 = vunpack.c.l.b16 %v216
    %v565 = vunpack.c.h.b16 %v216
    %v566 = vunpack.c.l.b16 %v217
    %v567 = vunpack.c.h.b16 %v217
    %v568 = vunpack.c.l.b16 %v218
    %v569 = vunpack.c.h.b16 %v218
    %v570 = vunpack.c.l.b16 %v219
    %v571 = vunpack.c.h.b16 %v219
    %v572 = vunpack.c.l.b16 %v220
    %v573 = vunpack.c.h.b16 %v220
    %v574 = vunpack.c.l.b16 %v221
    %v575 = vunpack.c.h.b16 %v221
    %v576 = vunpack.c.l.b16 %v222
    %v577 = vunpack.c.h.b16 %v222
    %v578 = vunpack.c.l.b16 %v223
    %v579 = vunpack.c.h.b16 %v223
    %v580 = vunpack.c.l.b16 %v224
    %v581 = vunpack.c.h.b16 %v224
    %v582 = vunpack.c.l.b16 %v225
    %v583 = vunpack.c.h.b16 %v225
    %v584 = vpack.c.b16 %v364, %v360
    %v585 = vpack.c.b16 %v365, %v361
    %v586 = vpack.c.b16 %v366, %v362
    %v587 = vpack.c.b16 %v367, %v363
    %v588 = vpack.c.b16 %v372, %v368
    %v589 = vpack.c.b16 %v373, %v369
    %v590 = vpack.c.b16 %v374, %v370
    %v591 = vpack.c.b16 %v375, %v371
    %v592 = vpack.c.b16 %v380, %v376
    %v593 = vpack.c.b16 %v381, %v377
    %v594 = vpack.c.b16 %v382, %v378
    %v595 = vpack.c.b16 %v383, %v379
    %v596 = vpack.c.b16 %v388, %v384
    %v597 = vpack.c.b16 %v389, %v385
    %v598 = vpack.c.b16 %v390, %v386
    %v599 = vpack.c.b16 %v391, %v387
    %v600 = vpack.c.b16 %v396, %v392
    %v601 = vpack.c.b16 %v397, %v393
    %v602 = vpack.c.b16 %v398, %v394
    %v603 = vpack.c.b16 %v399, %v395
    %v604 = vpack.c.b16 %v404, %v400
    %v605 = vpack.c.b16 %v405, %v401
    %v606 = vpack.c.b16 %v406, %v402
    %v607 = vpack.c.b16 %v407, %v403
    %v608 = vpack.c.b16 %v412, %v408
    %v609 = vpack.c.b16 %v413, %v409
    %v610 = vpack.c.b16 %v414, %v410
    %v611 = vpack.c.b16 %v415, %v411
    %v612 = vpack.c.b16 %v420, %v416
    %v613 = vpack.c.b16 %v421, %v417
    %v614 = vpack.c.b16 %v422, %v418
    %v615 = vpack.c.b16 %v423, %v419
    %v616 = vpack.c.b16 %v428, %v424
    %v617 = vpack.c.b16 %v429, %v425
    %v618 = vpack.c.b16 %v430, %v426
    %v619 = vpack.c.b16 %v431, %v427
    %v620 = vpack.c.b16 %v436, %v432
    %v621 = vpack.c.b16 %v437, %v433
    %v622 = vpack.c.b16 %v438, %v434
    %v623 = vpack.c.b16 %v439, %v435
    %v624 = vpack.c.b16 %v444, %v440
    %v625 = vpack.c.b16 %v445, %v441
    %v626 = vpack.c.b16 %v446, %v442
    %v627 = vpack.c.b16 %v447, %v443
    %v628 = vpack.c.b16 %v452, %v448
    %v629 = vpack.c.b16 %v453, %v449
    %v630 = vpack.c.b16 %v454, %v450
    %v631 = vpack.c.b16 %v455, %v451
    %v632 = vpack.c.b16 %v460, %v456
    %v633 = vpack.c.b16 %v461, %v457
    %v634 = vpack.c.b16 %v462, %v458
    %v635 = vpack.c.b16 %v463, %v459
    %v636 = vpack.c.b16 %v468, %v464
    %v637 = vpack.c.b16 %v469, %v465
    %v638 = vpack.c.b16 %v470, %v466
    %v639 = vpack.c.b16 %v471, %v467
    %v640 = vpack.c.b16 %v476, %v472
    %v641 = vpack.c.b16 %v477, %v473
    %v642 = vpack.c.b16 %v478, %v474
    %v643 = vpack.c.b16 %v479, %v475
    %v644 = vpack.c.b16 %v484, %v480
    %v645 = vpack.c.b16 %v485, %v481
    %v646 = vpack.c.b16 %v486, %v482
    %v647 = vpack.c.b16 %v487, %v483
    %v648 = vpack.c.b16 %v492, %v488
    %v649 = vpack.c.b16 %v493, %v489
    %v650 = vpack.c.b16 %v494, %v490
    %v651 = vpack.c.b16 %v495, %v491
    %v652 = vpack.c.b16 %v500, %v496
    %v653 = vpack.c.b16 %v501, %v497
    %v654 = vpack.c.b16 %v502, %v498
    %v655 = vpack.c.b16 %v503, %v499
    %v656 = vpack.c.b16 %v508, %v504
    %v657 = vpack.c.b16 %v509, %v505
    %v658 = vpack.c.b16 %v510, %v506
    %v659 = vpack.c.b16 %v511, %v507
    %v660 = vpack.c.b16 %v516, %v512
    %v661 = vpack.c.b16 %v517, %v513
    %v662 = vpack.c.b16 %v518, %v514
    %v663 = vpack.c.b16 %v519, %v515
    %v664 = vpack.c.b16 %v524, %v520
    %v665 = vpack.c.b16 %v525, %v521
    %v666 = vpack.c.b16 %v526, %v522
    %v667 = vpack.c.b16 %v527, %v523
    %v668 = vpack.c.b16 %v532, %v528
    %v669 = vpack.c.b16 %v533, %v529
    %v670 = vpack.c.b16 %v534, %v530
    %v671 = vpack.c.b16 %v535, %v531
    %v672 = vpack.c.b16 %v540, %v536
    %v673 = vpack.c.b16 %v541, %v537
    %v674 = vpack.c.b16 %v542, %v538
    %v675 = vpack.c.b16 %v543, %v539
    %v676 = vpack.c.b16 %v548, %v544
    %v677 = vpack.c.b16 %v549, %v545
    %v678 = vpack.c.b16 %v550, %v546
    %v679 = vpack.c.b16 %v551, %v547
    %v680 = vpack.c.b16 %v556, %v552
    %v681 = vpack.c.b16 %v557, %v553
    %v682 = vpack.c.b16 %v558, %v554
    %v683 = vpack.c.b16 %v559, %v555
    %v684 = vpack.c.b16 %v564, %v560
    %v685 = vpack.c.b16 %v565, %v561
    %v686 = vpack.c.b16 %v566, %v562
    %v687 = vpack.c.b16 %v567, %v563
    %v688 = vpack.c.b16 %v572, %v568
    %v689 = vpack.c.b16 %v573, %v569
    %v690 = vpack.c.b16 %v574, %v570
    %v691 = vpack.c.b16 %v575, %v571
    %v692 = vpack.c.b16 %v580, %v576
    %v693 = vpack.c.b16 %v581, %v577
    %v694 = vpack.c.b16 %v582, %v578
    %v695 = vpack.c.b16 %v583, %v579
    %vm804 = vcmask 474112
    %v806 = vsel %vm804, %v113, 0
    %vm808 = vcmask 1044480
    %v810 = vsel %vm808, %v692, 0
    %v813 = vsel %vm808, %v693, 0
    %v816 = vsel %vm808, %v694, 0
    %v819 = vsel %vm808, %v695, 0
    %821 = vmatprep.subr.bf16.mxu0 %v585
    %822 = vmatpush1.bf16.msra.mxu0 %v584
    %823 = vmatprep.subr.bf16.mxu0 %v589
    %824 = vmatpush1.bf16.msra.mxu0 %v588
    %825 = vmatprep.subr.bf16.mxu0 %v593
    %826 = vmatpush1.bf16.msra.mxu0 %v592
    %827 = vmatprep.subr.bf16.mxu0 %v597
    %828 = vmatpush1.bf16.msra.mxu0 %v596
    %829 = vmatprep.subr.bf16.mxu0 %v601
    %830 = vmatpush1.bf16.msra.mxu0 %v600
    %831 = vmatprep.subr.bf16.mxu0 %v605
    %832 = vmatpush1.bf16.msra.mxu0 %v604
    %833 = vmatprep.subr.bf16.mxu0 %v609
    %834 = vmatpush1.bf16.msra.mxu0 %v608
    %835 = vmatprep.subr.bf16.mxu0 %v613
    %836 = vmatpush1.bf16.msra.mxu0 %v612
    %837 = vmatprep.subr.bf16.mxu0 %v617
    %838 = vmatpush1.bf16.msra.mxu0 %v616
    %839 = vmatprep.subr.bf16.mxu0 %v621
    %840 = vmatpush1.bf16.msra.mxu0 %v620
    %841 = vmatprep.subr.bf16.mxu0 %v625
    %842 = vmatpush1.bf16.msra.mxu0 %v624
    %843 = vmatprep.subr.bf16.mxu0 %v629
    %844 = vmatpush1.bf16.msra.mxu0 %v628
    %845 = vmatprep.subr.bf16.mxu0 %v633
    %846 = vmatpush1.bf16.msra.mxu0 %v632
    %847 = vmatprep.subr.bf16.mxu0 %v637
    %848 = vmatpush1.bf16.msra.mxu0 %v636
    %849 = vmatprep.subr.bf16.mxu0 %v641
    %850 = vmatpush1.bf16.msra.mxu0 %v640
    %851 = vmatprep.subr.bf16.mxu0 %v645
    %852 = vmatpush1.bf16.msra.mxu0 %v644
    %853 = vmatprep.mubr.bf16.mxu0 %v111
    %854 = vmatmul.mubr.bf16.gmra.mrb[0].mxu0 %v110
    %v855 = vpop.f32.mrb[0].mxu0
    %v856 = vadd.f32 %v231, %v855
    %v857 = vpop.f32.mrb[0].mxu0
    %v858 = vadd.f32 %v235, %v857
    %v859 = vpop.f32.mrb[0].mxu0
    %v860 = vadd.f32 %v231, %v859
    %v861 = vpop.f32.mrb[0].mxu0
    %v862 = vadd.f32 %v235, %v861
    %863 = vdwg.mxu0
    %864 = vmatprep.subr.bf16.mxu0 %v649
    %865 = vmatpush1.bf16.msra.mxu0 %v648
    %866 = vmatprep.subr.bf16.mxu0 %v653
    %867 = vmatpush1.bf16.msra.mxu0 %v652
    %868 = vmatprep.subr.bf16.mxu0 %v657
    %869 = vmatpush1.bf16.msra.mxu0 %v656
    %870 = vmatprep.subr.bf16.mxu0 %v661
    %871 = vmatpush1.bf16.msra.mxu0 %v660
    %872 = vmatprep.subr.bf16.mxu0 %v665
    %873 = vmatpush1.bf16.msra.mxu0 %v664
    %874 = vmatprep.subr.bf16.mxu0 %v669
    %875 = vmatpush1.bf16.msra.mxu0 %v668
    %876 = vmatprep.subr.bf16.mxu0 %v673
    %877 = vmatpush1.bf16.msra.mxu0 %v672
    %878 = vmatprep.subr.bf16.mxu0 %v677
    %879 = vmatpush1.bf16.msra.mxu0 %v676
    %880 = vmatprep.subr.bf16.mxu0 %v681
    %881 = vmatpush1.bf16.msra.mxu0 %v680
    %882 = vmatprep.subr.bf16.mxu0 %v685
    %883 = vmatpush1.bf16.msra.mxu0 %v684
    %884 = vmatprep.subr.bf16.mxu0 %v689
    %885 = vmatpush1.bf16.msra.mxu0 %v688
    %886 = vmatprep.subr.bf16.mxu0 %v813
    %887 = vmatpush1.bf16.msra.mxu0 %v810
    %888 = vmatprep.subr.bf16.mxu0 0
    %889 = vmatpush1.bf16.msra.mxu0 0
    %890 = vmatprep.subr.bf16.mxu0 0
    %891 = vmatpush1.bf16.msra.mxu0 0
    %892 = vmatprep.subr.bf16.mxu0 0
    %893 = vmatpush1.bf16.msra.mxu0 0
    %894 = vmatprep.subr.bf16.mxu0 0
    %895 = vmatpush1.bf16.msra.mxu0 0
    %896 = vmatprep.mubr.bf16.mxu0 %v806
    %897 = vmatmul.mubr.bf16.gmra.mrb[0].mxu0 %v112
    %v898 = vpop.f32.mrb[0].mxu0
    %v899 = vadd.f32 %v856, %v898
    %v900 = vpop.f32.mrb[0].mxu0
    %v901 = vadd.f32 %v858, %v900
    %v902 = vpop.f32.mrb[0].mxu0
    %v903 = vadd.f32 %v860, %v902
    %v904 = vpop.f32.mrb[0].mxu0
    %v905 = vadd.f32 %v862, %v904
    %906 = vdwg.mxu0
    %907 = vmatprep.subr.bf16.mxu0 %v587
    %908 = vmatpush1.bf16.msra.mxu0 %v586
    %909 = vmatprep.subr.bf16.mxu0 %v591
    %910 = vmatpush1.bf16.msra.mxu0 %v590
    %911 = vmatprep.subr.bf16.mxu0 %v595
    %912 = vmatpush1.bf16.msra.mxu0 %v594
    %913 = vmatprep.subr.bf16.mxu0 %v599
    %914 = vmatpush1.bf16.msra.mxu0 %v598
    %915 = vmatprep.subr.bf16.mxu0 %v603
    %916 = vmatpush1.bf16.msra.mxu0 %v602
    %917 = vmatprep.subr.bf16.mxu0 %v607
    %918 = vmatpush1.bf16.msra.mxu0 %v606
    %919 = vmatprep.subr.bf16.mxu0 %v611
    %920 = vmatpush1.bf16.msra.mxu0 %v610
    %921 = vmatprep.subr.bf16.mxu0 %v615
    %922 = vmatpush1.bf16.msra.mxu0 %v614
    %923 = vmatprep.subr.bf16.mxu0 %v619
    %924 = vmatpush1.bf16.msra.mxu0 %v618
    %925 = vmatprep.subr.bf16.mxu0 %v623
    %926 = vmatpush1.bf16.msra.mxu0 %v622
    %927 = vmatprep.subr.bf16.mxu0 %v627
    %928 = vmatpush1.bf16.msra.mxu0 %v626
    %929 = vmatprep.subr.bf16.mxu0 %v631
    %930 = vmatpush1.bf16.msra.mxu0 %v630
    %931 = vmatprep.subr.bf16.mxu0 %v635
    %932 = vmatpush1.bf16.msra.mxu0 %v634
    %933 = vmatprep.subr.bf16.mxu0 %v639
    %934 = vmatpush1.bf16.msra.mxu0 %v638
    %935 = vmatprep.subr.bf16.mxu0 %v643
    %936 = vmatpush1.bf16.msra.mxu0 %v642
    %937 = vmatprep.subr.bf16.mxu0 %v647
    %938 = vmatpush1.bf16.msra.mxu0 %v646
    %939 = vmatprep.mubr.bf16.mxu0 %v111
    %940 = vmatmul.mubr.bf16.gmra.mrb[0].mxu0 %v110
    %v941 = vpop.f32.mrb[0].mxu0
    %v942 = vadd.f32 %v239, %v941
    %v943 = vpop.f32.mrb[0].mxu0
    %v944 = vadd.f32 %v243, %v943
    %v945 = vpop.f32.mrb[0].mxu0
    %v946 = vadd.f32 %v239, %v945
    %v947 = vpop.f32.mrb[0].mxu0
    %v948 = vadd.f32 %v243, %v947
    %949 = vdwg.mxu0
    %950 = vmatprep.subr.bf16.mxu0 %v651
    %951 = vmatpush1.bf16.msra.mxu0 %v650
    %952 = vmatprep.subr.bf16.mxu0 %v655
    %953 = vmatpush1.bf16.msra.mxu0 %v654
    %954 = vmatprep.subr.bf16.mxu0 %v659
    %955 = vmatpush1.bf16.msra.mxu0 %v658
    %956 = vmatprep.subr.bf16.mxu0 %v663
    %957 = vmatpush1.bf16.msra.mxu0 %v662
    %958 = vmatprep.subr.bf16.mxu0 %v667
    %959 = vmatpush1.bf16.msra.mxu0 %v666
    %960 = vmatprep.subr.bf16.mxu0 %v671
    %961 = vmatpush1.bf16.msra.mxu0 %v670
    %962 = vmatprep.subr.bf16.mxu0 %v675
    %963 = vmatpush1.bf16.msra.mxu0 %v674
    %964 = vmatprep.subr.bf16.mxu0 %v679
    %965 = vmatpush1.bf16.msra.mxu0 %v678
    %966 = vmatprep.subr.bf16.mxu0 %v683
    %967 = vmatpush1.bf16.msra.mxu0 %v682
    %968 = vmatprep.subr.bf16.mxu0 %v687
    %969 = vmatpush1.bf16.msra.mxu0 %v686
    %970 = vmatprep.subr.bf16.mxu0 %v691
    %971 = vmatpush1.bf16.msra.mxu0 %v690
    %972 = vmatprep.subr.bf16.mxu0 %v819
    %973 = vmatpush1.bf16.msra.mxu0 %v816
    %974 = vmatprep.subr.bf16.mxu0 0
    %975 = vmatpush1.bf16.msra.mxu0 0
    %976 = vmatprep.subr.bf16.mxu0 0
    %977 = vmatpush1.bf16.msra.mxu0 0
    %978 = vmatprep.subr.bf16.mxu0 0
    %979 = vmatpush1.bf16.msra.mxu0 0
    %980 = vmatprep.subr.bf16.mxu0 0
    %981 = vmatpush1.bf16.msra.mxu0 0
    %982 = vmatprep.mubr.bf16.mxu0 %v806
    %983 = vmatmul.mubr.bf16.gmra.mrb[0].mxu0 %v112
    %v984 = vpop.f32.mrb[0].mxu0
    %v985 = vadd.f32 %v942, %v984
    %v986 = vpop.f32.mrb[0].mxu0
    %v987 = vadd.f32 %v944, %v986
    %v988 = vpop.f32.mrb[0].mxu0
    %v989 = vadd.f32 %v946, %v988
    %v990 = vpop.f32.mrb[0].mxu0
    %v991 = vadd.f32 %v948, %v990
    %992 = vdwg.mxu0
    %v993 = vmax.f32 %v899, 0.0
    %v994 = vmax.f32 %v901, 0.0
    %v995 = vmax.f32 %v985, 0.0
    %v996 = vmax.f32 %v987, 0.0
    %v997 = vmax.f32 %v903, 0.0
    %v998 = vmax.f32 %v905, 0.0
    %v999 = vmax.f32 %v989, 0.0
    %v1000 = vmax.f32 %v991, 0.0
    %v1001 = vpack.c.bf16 %v997, %v993
    %v1002 = vpack.c.bf16 %v998, %v994
    %v1003 = vpack.c.bf16 %v999, %v995
    %v1004 = vpack.c.bf16 %v1000, %v996
    %v1005 = vld [vmem:[#allocation7] sm:$0xff]
    %v1006 = vld [vmem:[#allocation7 + $0x8] sm:$0xff]
    %v1007 = vld [vmem:[#allocation7 + $0x10] sm:$0xff]
    %v1008 = vld [vmem:[#allocation7 + $0x18] sm:$0xff]
    %v1009 = vld [vmem:[#allocation7 + $0x20] sm:$0xff]
    %v1010 = vld [vmem:[#allocation7 + $0x28] sm:$0xff]
    %v1011 = vld [vmem:[#allocation7 + $0x30] sm:$0xff]
    %v1012 = vld [vmem:[#allocation7 + $0x38] sm:$0xff]
    %v1013 = vld [vmem:[#allocation7 + $0x40] sm:$0xff]
    %v1014 = vld [vmem:[#allocation7 + $0x48] sm:$0xff]
    %v1015 = vld [vmem:[#allocation7 + $0x50] sm:$0xff]
    %v1016 = vld [vmem:[#allocation7 + $0x58] sm:$0xff]
    %v1017 = vld [vmem:[#allocation7 + $0x60] sm:$0xff]
    %v1018 = vld [vmem:[#allocation7 + $0x68] sm:$0xff]
    %v1019 = vld [vmem:[#allocation7 + $0x70] sm:$0xff]
    %v1020 = vld [vmem:[#allocation7 + $0x78] sm:$0xff]
    %v1021 = vld [vmem:[#allocation7 + $0x80] sm:$0xff]
    %v1022 = vld [vmem:[#allocation7 + $0x88] sm:$0xff]
    %v1023 = vld [vmem:[#allocation7 + $0x90] sm:$0xff]
    %v1024 = vld [vmem:[#allocation7 + $0x98] sm:$0xff]
    %v1025 = vld [vmem:[#allocation7 + $0xa0] sm:$0xff]
    %v1026 = vld [vmem:[#allocation7 + $0xa8] sm:$0xff]
    %v1027 = vld [vmem:[#allocation7 + $0xb0] sm:$0xff]
    %v1028 = vld [vmem:[#allocation7 + $0xb8] sm:$0xff]
    %v1029 = vld [vmem:[#allocation7 + $0xc0] sm:$0xff]
    %v1030 = vld [vmem:[#allocation7 + $0xc8] sm:$0xff]
    %v1031 = vld [vmem:[#allocation7 + $0xd0] sm:$0xff]
    %v1032 = vld [vmem:[#allocation7 + $0xd8] sm:$0xff]
    %v1033 = vld [vmem:[#allocation7 + $0xe0] sm:$0xff]
    %v1034 = vld [vmem:[#allocation7 + $0xe8] sm:$0xff]
    %v1035 = vld [vmem:[#allocation7 + $0xf0] sm:$0xff]
    %v1036 = vld [vmem:[#allocation7 + $0xf8] sm:$0xff]
    %v1037 = vld [vmem:[#allocation7 + $0x100] sm:$0xff]
    %v1038 = vld [vmem:[#allocation7 + $0x108] sm:$0xff]
    %v1039 = vld [vmem:[#allocation7 + $0x110] sm:$0xff]
    %v1040 = vld [vmem:[#allocation7 + $0x118] sm:$0xff]
    %v1041 = vld [vmem:[#allocation7 + $0x120] sm:$0xff]
    %v1042 = vld [vmem:[#allocation7 + $0x128] sm:$0xff]
    %v1043 = vld [vmem:[#allocation7 + $0x130] sm:$0xff]
    %v1044 = vld [vmem:[#allocation7 + $0x138] sm:$0xff]
    %v1045 = vld [vmem:[#allocation7 + $0x140] sm:$0xff]
    %v1046 = vld [vmem:[#allocation7 + $0x148] sm:$0xff]
    %v1047 = vld [vmem:[#allocation7 + $0x150] sm:$0xff]
    %v1048 = vld [vmem:[#allocation7 + $0x158] sm:$0xff]
    %v1049 = vld [vmem:[#allocation7 + $0x160] sm:$0xff]
    %v1050 = vld [vmem:[#allocation7 + $0x168] sm:$0xff]
    %v1051 = vld [vmem:[#allocation7 + $0x170] sm:$0xff]
    %v1052 = vld [vmem:[#allocation7 + $0x178] sm:$0xff]
    %v1053 = vld [vmem:[#allocation7 + $0x180] sm:$0xff]
    %v1054 = vld [vmem:[#allocation7 + $0x188] sm:$0xff]
    %v1055 = vld [vmem:[#allocation7 + $0x190] sm:$0xff]
    %v1056 = vld [vmem:[#allocation7 + $0x198] sm:$0xff]
    %v1057 = vld [vmem:[#allocation7 + $0x1a0] sm:$0xff]
    %v1058 = vld [vmem:[#allocation7 + $0x1a8] sm:$0xff]
    %v1059 = vld [vmem:[#allocation7 + $0x1b0] sm:$0xff]
    %v1060 = vld [vmem:[#allocation7 + $0x1b8] sm:$0xff]
    %v1061 = vld [vmem:[#allocation7 + $0x1c0] sm:$0xff]
    %v1062 = vld [vmem:[#allocation7 + $0x1c8] sm:$0xff]
    %v1063 = vld [vmem:[#allocation7 + $0x1d0] sm:$0xff]
    %v1064 = vld [vmem:[#allocation7 + $0x1d8] sm:$0xff]
    %v1065 = vld [vmem:[#allocation7 + $0x1e0] sm:$0xff]
    %v1066 = vld [vmem:[#allocation7 + $0x1e8] sm:$0xff]
    %v1067 = vld [vmem:[#allocation7 + $0x1f0] sm:$0xff]
    %v1068 = vld [vmem:[#allocation7 + $0x1f8] sm:$0xff]
    %v1069 = vld [vmem:[%s4] sm:$0x3]
    %v1071 = vlaneseq
    %v1072 = vshrl.u32 %v1071, 7
    %v1073 = vsub.s32 0, %v1072
    %v1074 = vrot.slane %v1069, %v1073
    %v1075 = vlaneseq
    %v1076 = vshrl.u32 %v1075, 7
    %v1077 = vsub.s32 1, %v1076
    %v1078 = vrot.slane %v1069, %v1077
    %v1145 = vunpack.c.l.b16 %v1005
    %v1146 = vunpack.c.h.b16 %v1005
    %v1147 = vunpack.c.l.b16 %v1006
    %v1148 = vunpack.c.h.b16 %v1006
    %v1149 = vunpack.c.l.b16 %v1007
    %v1150 = vunpack.c.h.b16 %v1007
    %v1151 = vunpack.c.l.b16 %v1008
    %v1152 = vunpack.c.h.b16 %v1008
    %v1153 = vunpack.c.l.b16 %v1009
    %v1154 = vunpack.c.h.b16 %v1009
    %v1155 = vunpack.c.l.b16 %v1010
    %v1156 = vunpack.c.h.b16 %v1010
    %v1157 = vunpack.c.l.b16 %v1011
    %v1158 = vunpack.c.h.b16 %v1011
    %v1159 = vunpack.c.l.b16 %v1012
    %v1160 = vunpack.c.h.b16 %v1012
    %v1161 = vunpack.c.l.b16 %v1013
    %v1162 = vunpack.c.h.b16 %v1013
    %v1163 = vunpack.c.l.b16 %v1014
    %v1164 = vunpack.c.h.b16 %v1014
    %v1165 = vunpack.c.l.b16 %v1015
    %v1166 = vunpack.c.h.b16 %v1015
    %v1167 = vunpack.c.l.b16 %v1016
    %v1168 = vunpack.c.h.b16 %v1016
    %v1169 = vunpack.c.l.b16 %v1017
    %v1170 = vunpack.c.h.b16 %v1017
    %v1171 = vunpack.c.l.b16 %v1018
    %v1172 = vunpack.c.h.b16 %v1018
    %v1173 = vunpack.c.l.b16 %v1019
    %v1174 = vunpack.c.h.b16 %v1019
    %v1175 = vunpack.c.l.b16 %v1020
    %v1176 = vunpack.c.h.b16 %v1020
    %v1177 = vunpack.c.l.b16 %v1021
    %v1178 = vunpack.c.h.b16 %v1021
    %v1179 = vunpack.c.l.b16 %v1022
    %v1180 = vunpack.c.h.b16 %v1022
    %v1181 = vunpack.c.l.b16 %v1023
    %v1182 = vunpack.c.h.b16 %v1023
    %v1183 = vunpack.c.l.b16 %v1024
    %v1184 = vunpack.c.h.b16 %v1024
    %v1185 = vunpack.c.l.b16 %v1025
    %v1186 = vunpack.c.h.b16 %v1025
    %v1187 = vunpack.c.l.b16 %v1026
    %v1188 = vunpack.c.h.b16 %v1026
    %v1189 = vunpack.c.l.b16 %v1027
    %v1190 = vunpack.c.h.b16 %v1027
    %v1191 = vunpack.c.l.b16 %v1028
    %v1192 = vunpack.c.h.b16 %v1028
    %v1193 = vunpack.c.l.b16 %v1029
    %v1194 = vunpack.c.h.b16 %v1029
    %v1195 = vunpack.c.l.b16 %v1030
    %v1196 = vunpack.c.h.b16 %v1030
    %v1197 = vunpack.c.l.b16 %v1031
    %v1198 = vunpack.c.h.b16 %v1031
    %v1199 = vunpack.c.l.b16 %v1032
    %v1200 = vunpack.c.h.b16 %v1032
    %v1201 = vunpack.c.l.b16 %v1033
    %v1202 = vunpack.c.h.b16 %v1033
    %v1203 = vunpack.c.l.b16 %v1034
    %v1204 = vunpack.c.h.b16 %v1034
    %v1205 = vunpack.c.l.b16 %v1035
    %v1206 = vunpack.c.h.b16 %v1035
    %v1207 = vunpack.c.l.b16 %v1036
    %v1208 = vunpack.c.h.b16 %v1036
    %v1209 = vunpack.c.l.b16 %v1037
    %v1210 = vunpack.c.h.b16 %v1037
    %v1211 = vunpack.c.l.b16 %v1038
    %v1212 = vunpack.c.h.b16 %v1038
    %v1213 = vunpack.c.l.b16 %v1039
    %v1214 = vunpack.c.h.b16 %v1039
    %v1215 = vunpack.c.l.b16 %v1040
    %v1216 = vunpack.c.h.b16 %v1040
    %v1217 = vunpack.c.l.b16 %v1041
    %v1218 = vunpack.c.h.b16 %v1041
    %v1219 = vunpack.c.l.b16 %v1042
    %v1220 = vunpack.c.h.b16 %v1042
    %v1221 = vunpack.c.l.b16 %v1043
    %v1222 = vunpack.c.h.b16 %v1043
    %v1223 = vunpack.c.l.b16 %v1044
    %v1224 = vunpack.c.h.b16 %v1044
    %v1225 = vunpack.c.l.b16 %v1045
    %v1226 = vunpack.c.h.b16 %v1045
    %v1227 = vunpack.c.l.b16 %v1046
    %v1228 = vunpack.c.h.b16 %v1046
    %v1229 = vunpack.c.l.b16 %v1047
    %v1230 = vunpack.c.h.b16 %v1047
    %v1231 = vunpack.c.l.b16 %v1048
    %v1232 = vunpack.c.h.b16 %v1048
    %v1233 = vunpack.c.l.b16 %v1049
    %v1234 = vunpack.c.h.b16 %v1049
    %v1235 = vunpack.c.l.b16 %v1050
    %v1236 = vunpack.c.h.b16 %v1050
    %v1237 = vunpack.c.l.b16 %v1051
    %v1238 = vunpack.c.h.b16 %v1051
    %v1239 = vunpack.c.l.b16 %v1052
    %v1240 = vunpack.c.h.b16 %v1052
    %v1241 = vunpack.c.l.b16 %v1053
    %v1242 = vunpack.c.h.b16 %v1053
    %v1243 = vunpack.c.l.b16 %v1054
    %v1244 = vunpack.c.h.b16 %v1054
    %v1245 = vunpack.c.l.b16 %v1055
    %v1246 = vunpack.c.h.b16 %v1055
    %v1247 = vunpack.c.l.b16 %v1056
    %v1248 = vunpack.c.h.b16 %v1056
    %v1249 = vunpack.c.l.b16 %v1057
    %v1250 = vunpack.c.h.b16 %v1057
    %v1251 = vunpack.c.l.b16 %v1058
    %v1252 = vunpack.c.h.b16 %v1058
    %v1253 = vunpack.c.l.b16 %v1059
    %v1254 = vunpack.c.h.b16 %v1059
    %v1255 = vunpack.c.l.b16 %v1060
    %v1256 = vunpack.c.h.b16 %v1060
    %v1257 = vunpack.c.l.b16 %v1061
    %v1258 = vunpack.c.h.b16 %v1061
    %v1259 = vunpack.c.l.b16 %v1062
    %v1260 = vunpack.c.h.b16 %v1062
    %v1261 = vunpack.c.l.b16 %v1063
    %v1262 = vunpack.c.h.b16 %v1063
    %v1263 = vunpack.c.l.b16 %v1064
    %v1264 = vunpack.c.h.b16 %v1064
    %v1265 = vunpack.c.l.b16 %v1065
    %v1266 = vunpack.c.h.b16 %v1065
    %v1267 = vunpack.c.l.b16 %v1066
    %v1268 = vunpack.c.h.b16 %v1066
    %v1269 = vunpack.c.l.b16 %v1067
    %v1270 = vunpack.c.h.b16 %v1067
    %v1271 = vunpack.c.l.b16 %v1068
    %v1272 = vunpack.c.h.b16 %v1068
    %v1273 = vpack.c.b16 %v1147, %v1145
    %v1274 = vpack.c.b16 %v1148, %v1146
    %v1275 = vpack.c.b16 %v1151, %v1149
    %v1276 = vpack.c.b16 %v1152, %v1150
    %v1277 = vpack.c.b16 %v1155, %v1153
    %v1278 = vpack.c.b16 %v1156, %v1154
    %v1279 = vpack.c.b16 %v1159, %v1157
    %v1280 = vpack.c.b16 %v1160, %v1158
    %v1281 = vpack.c.b16 %v1163, %v1161
    %v1282 = vpack.c.b16 %v1164, %v1162
    %v1283 = vpack.c.b16 %v1167, %v1165
    %v1284 = vpack.c.b16 %v1168, %v1166
    %v1285 = vpack.c.b16 %v1171, %v1169
    %v1286 = vpack.c.b16 %v1172, %v1170
    %v1287 = vpack.c.b16 %v1175, %v1173
    %v1288 = vpack.c.b16 %v1176, %v1174
    %v1289 = vpack.c.b16 %v1179, %v1177
    %v1290 = vpack.c.b16 %v1180, %v1178
    %v1291 = vpack.c.b16 %v1183, %v1181
    %v1292 = vpack.c.b16 %v1184, %v1182
    %v1293 = vpack.c.b16 %v1187, %v1185
    %v1294 = vpack.c.b16 %v1188, %v1186
    %v1295 = vpack.c.b16 %v1191, %v1189
    %v1296 = vpack.c.b16 %v1192, %v1190
    %v1297 = vpack.c.b16 %v1195, %v1193
    %v1298 = vpack.c.b16 %v1196, %v1194
    %v1299 = vpack.c.b16 %v1199, %v1197
    %v1300 = vpack.c.b16 %v1200, %v1198
    %v1301 = vpack.c.b16 %v1203, %v1201
    %v1302 = vpack.c.b16 %v1204, %v1202
    %v1303 = vpack.c.b16 %v1207, %v1205
    %v1304 = vpack.c.b16 %v1208, %v1206
    %v1305 = vpack.c.b16 %v1211, %v1209
    %v1306 = vpack.c.b16 %v1212, %v1210
    %v1307 = vpack.c.b16 %v1215, %v1213
    %v1308 = vpack.c.b16 %v1216, %v1214
    %v1309 = vpack.c.b16 %v1219, %v1217
    %v1310 = vpack.c.b16 %v1220, %v1218
    %v1311 = vpack.c.b16 %v1223, %v1221
    %v1312 = vpack.c.b16 %v1224, %v1222
    %v1313 = vpack.c.b16 %v1227, %v1225
    %v1314 = vpack.c.b16 %v1228, %v1226
    %v1315 = vpack.c.b16 %v1231, %v1229
    %v1316 = vpack.c.b16 %v1232, %v1230
    %v1317 = vpack.c.b16 %v1235, %v1233
    %v1318 = vpack.c.b16 %v1236, %v1234
    %v1319 = vpack.c.b16 %v1239, %v1237
    %v1320 = vpack.c.b16 %v1240, %v1238
    %v1321 = vpack.c.b16 %v1243, %v1241
    %v1322 = vpack.c.b16 %v1244, %v1242
    %v1323 = vpack.c.b16 %v1247, %v1245
    %v1324 = vpack.c.b16 %v1248, %v1246
    %v1325 = vpack.c.b16 %v1251, %v1249
    %v1326 = vpack.c.b16 %v1252, %v1250
    %v1327 = vpack.c.b16 %v1255, %v1253
    %v1328 = vpack.c.b16 %v1256, %v1254
    %v1329 = vpack.c.b16 %v1259, %v1257
    %v1330 = vpack.c.b16 %v1260, %v1258
    %v1331 = vpack.c.b16 %v1263, %v1261
    %v1332 = vpack.c.b16 %v1264, %v1262
    %v1333 = vpack.c.b16 %v1267, %v1265
    %v1334 = vpack.c.b16 %v1268, %v1266
    %v1335 = vpack.c.b16 %v1271, %v1269
    %v1336 = vpack.c.b16 %v1272, %v1270
    %1401 = vmatprep.subr.bf16.mxu0 %v1274
    %1402 = vmatpush1.bf16.msra.mxu0 %v1273
    %1403 = vmatprep.subr.bf16.mxu0 %v1276
    %1404 = vmatpush1.bf16.msra.mxu0 %v1275
    %1405 = vmatprep.subr.bf16.mxu0 %v1278
    %1406 = vmatpush1.bf16.msra.mxu0 %v1277
    %1407 = vmatprep.subr.bf16.mxu0 %v1280
    %1408 = vmatpush1.bf16.msra.mxu0 %v1279
    %1409 = vmatprep.subr.bf16.mxu0 %v1282
    %1410 = vmatpush1.bf16.msra.mxu0 %v1281
    %1411 = vmatprep.subr.bf16.mxu0 %v1284
    %1412 = vmatpush1.bf16.msra.mxu0 %v1283
    %1413 = vmatprep.subr.bf16.mxu0 %v1286
    %1414 = vmatpush1.bf16.msra.mxu0 %v1285
    %1415 = vmatprep.subr.bf16.mxu0 %v1288
    %1416 = vmatpush1.bf16.msra.mxu0 %v1287
    %1417 = vmatprep.subr.bf16.mxu0 %v1290
    %1418 = vmatpush1.bf16.msra.mxu0 %v1289
    %1419 = vmatprep.subr.bf16.mxu0 %v1292
    %1420 = vmatpush1.bf16.msra.mxu0 %v1291
    %1421 = vmatprep.subr.bf16.mxu0 %v1294
    %1422 = vmatpush1.bf16.msra.mxu0 %v1293
    %1423 = vmatprep.subr.bf16.mxu0 %v1296
    %1424 = vmatpush1.bf16.msra.mxu0 %v1295
    %1425 = vmatprep.subr.bf16.mxu0 %v1298
    %1426 = vmatpush1.bf16.msra.mxu0 %v1297
    %1427 = vmatprep.subr.bf16.mxu0 %v1300
    %1428 = vmatpush1.bf16.msra.mxu0 %v1299
    %1429 = vmatprep.subr.bf16.mxu0 %v1302
    %1430 = vmatpush1.bf16.msra.mxu0 %v1301
    %1431 = vmatprep.subr.bf16.mxu0 %v1304
    %1432 = vmatpush1.bf16.msra.mxu0 %v1303
    %1433 = vmatprep.mubr.bf16.mxu0 %v1002
    %1434 = vmatmul.mubr.bf16.gmra.mrb[0].mxu0 %v1001
    %v1435 = vpop.f32.mrb[0].mxu0
    %v1436 = vadd.f32 %v1074, %v1435
    %v1437 = vpop.f32.mrb[0].mxu0
    %v1438 = vadd.f32 %v1078, %v1437
    %v1439 = vpop.f32.mrb[0].mxu0
    %v1440 = vadd.f32 %v1074, %v1439
    %v1441 = vpop.f32.mrb[0].mxu0
    %v1442 = vadd.f32 %v1078, %v1441
    %1443 = vdwg.mxu0
    %1444 = vmatprep.subr.bf16.mxu0 %v1306
    %1445 = vmatpush1.bf16.msra.mxu0 %v1305
    %1446 = vmatprep.subr.bf16.mxu0 %v1308
    %1447 = vmatpush1.bf16.msra.mxu0 %v1307
    %1448 = vmatprep.subr.bf16.mxu0 %v1310
    %1449 = vmatpush1.bf16.msra.mxu0 %v1309
    %1450 = vmatprep.subr.bf16.mxu0 %v1312
    %1451 = vmatpush1.bf16.msra.mxu0 %v1311
    %1452 = vmatprep.subr.bf16.mxu0 %v1314
    %1453 = vmatpush1.bf16.msra.mxu0 %v1313
    %1454 = vmatprep.subr.bf16.mxu0 %v1316
    %1455 = vmatpush1.bf16.msra.mxu0 %v1315
    %1456 = vmatprep.subr.bf16.mxu0 %v1318
    %1457 = vmatpush1.bf16.msra.mxu0 %v1317
    %1458 = vmatprep.subr.bf16.mxu0 %v1320
    %1459 = vmatpush1.bf16.msra.mxu0 %v1319
    %1460 = vmatprep.subr.bf16.mxu0 %v1322
    %1461 = vmatpush1.bf16.msra.mxu0 %v1321
    %1462 = vmatprep.subr.bf16.mxu0 %v1324
    %1463 = vmatpush1.bf16.msra.mxu0 %v1323
    %1464 = vmatprep.subr.bf16.mxu0 %v1326
    %1465 = vmatpush1.bf16.msra.mxu0 %v1325
    %1466 = vmatprep.subr.bf16.mxu0 %v1328
    %1467 = vmatpush1.bf16.msra.mxu0 %v1327
    %1468 = vmatprep.subr.bf16.mxu0 %v1330
    %1469 = vmatpush1.bf16.msra.mxu0 %v1329
    %1470 = vmatprep.subr.bf16.mxu0 %v1332
    %1471 = vmatpush1.bf16.msra.mxu0 %v1331
    %1472 = vmatprep.subr.bf16.mxu0 %v1334
    %1473 = vmatpush1.bf16.msra.mxu0 %v1333
    %1474 = vmatprep.subr.bf16.mxu0 %v1336
    %1475 = vmatpush1.bf16.msra.mxu0 %v1335
    %1476 = vmatprep.mubr.bf16.mxu0 %v1004
    %1477 = vmatmul.mubr.bf16.gmra.mrb[0].mxu0 %v1003
    %v1478 = vpop.f32.mrb[0].mxu0
    %v1479 = vadd.f32 %v1436, %v1478
    %v1480 = vpop.f32.mrb[0].mxu0
    %v1481 = vadd.f32 %v1438, %v1480
    %v1482 = vpop.f32.mrb[0].mxu0
    %v1483 = vadd.f32 %v1440, %v1482
    %v1484 = vpop.f32.mrb[0].mxu0
    %v1485 = vadd.f32 %v1442, %v1484
    %1486 = vdwg.mxu0
    %v1487 = vmax.f32 %v1479, 0.0
    %v1488 = vmax.f32 %v1481, 0.0
    %v1489 = vmax.f32 %v1483, 0.0
    %v1490 = vmax.f32 %v1485, 0.0
    %v1491 = vpack.c.bf16 %v1489, %v1487
    %v1492 = vpack.c.bf16 %v1490, %v1488
    %v1493 = vld [vmem:[#allocation8] sm:$0xff]
    %v1494 = vld [vmem:[#allocation8 + $0x8] sm:$0xff]
    %v1495 = vld [vmem:[#allocation8 + $0x10] sm:$0xff]
    %v1496 = vld [vmem:[#allocation8 + $0x18] sm:$0xff]
    %v1497 = vld [vmem:[#allocation8 + $0x20] sm:$0xff]
    %v1498 = vld [vmem:[#allocation8 + $0x28] sm:$0xff]
    %v1499 = vld [vmem:[#allocation8 + $0x30] sm:$0xff]
    %v1500 = vld [vmem:[#allocation8 + $0x38] sm:$0xff]
    %v1501 = vld [vmem:[#allocation8 + $0x40] sm:$0xff]
    %v1502 = vld [vmem:[#allocation8 + $0x48] sm:$0xff]
    %v1503 = vld [vmem:[#allocation8 + $0x50] sm:$0xff]
    %v1504 = vld [vmem:[#allocation8 + $0x58] sm:$0xff]
    %v1505 = vld [vmem:[#allocation8 + $0x60] sm:$0xff]
    %v1506 = vld [vmem:[#allocation8 + $0x68] sm:$0xff]
    %v1507 = vld [vmem:[#allocation8 + $0x70] sm:$0xff]
    %v1508 = vld [vmem:[#allocation8 + $0x78] sm:$0xff]
    %v1509 = vld [vmem:[#allocation8 + $0x80] sm:$0xff]
    %v1510 = vld [vmem:[#allocation8 + $0x88] sm:$0xff]
    %v1511 = vld [vmem:[#allocation8 + $0x90] sm:$0xff]
    %v1512 = vld [vmem:[#allocation8 + $0x98] sm:$0xff]
    %v1513 = vld [vmem:[#allocation8 + $0xa0] sm:$0xff]
    %v1514 = vld [vmem:[#allocation8 + $0xa8] sm:$0xff]
    %v1515 = vld [vmem:[#allocation8 + $0xb0] sm:$0xff]
    %v1516 = vld [vmem:[#allocation8 + $0xb8] sm:$0xff]
    %v1517 = vld [vmem:[#allocation8 + $0xc0] sm:$0xff]
    %v1518 = vld [vmem:[#allocation8 + $0xc8] sm:$0xff]
    %v1519 = vld [vmem:[#allocation8 + $0xd0] sm:$0xff]
    %v1520 = vld [vmem:[#allocation8 + $0xd8] sm:$0xff]
    %v1521 = vld [vmem:[#allocation8 + $0xe0] sm:$0xff]
    %v1522 = vld [vmem:[#allocation8 + $0xe8] sm:$0xff]
    %v1523 = vld [vmem:[#allocation8 + $0xf0] sm:$0xff]
    %v1524 = vld [vmem:[#allocation8 + $0xf8] sm:$0xff]
    %v1525 = vld [vmem:[%s6] sm:$0x3]
    %v1527 = vlaneseq
    %v1528 = vshrl.u32 %v1527, 7
    %v1529 = vsub.s32 0, %v1528
    %v1530 = vrot.slane %v1525, %v1529
    %v1531 = vlaneseq
    %v1532 = vshrl.u32 %v1531, 7
    %v1533 = vsub.s32 1, %v1532
    %v1534 = vrot.slane %v1525, %v1533
    %v1569 = vunpack.c.l.b16 %v1493
    %v1570 = vunpack.c.h.b16 %v1493
    %v1571 = vunpack.c.l.b16 %v1494
    %v1572 = vunpack.c.h.b16 %v1494
    %v1573 = vunpack.c.l.b16 %v1495
    %v1574 = vunpack.c.h.b16 %v1495
    %v1575 = vunpack.c.l.b16 %v1496
    %v1576 = vunpack.c.h.b16 %v1496
    %v1577 = vunpack.c.l.b16 %v1497
    %v1578 = vunpack.c.h.b16 %v1497
    %v1579 = vunpack.c.l.b16 %v1498
    %v1580 = vunpack.c.h.b16 %v1498
    %v1581 = vunpack.c.l.b16 %v1499
    %v1582 = vunpack.c.h.b16 %v1499
    %v1583 = vunpack.c.l.b16 %v1500
    %v1584 = vunpack.c.h.b16 %v1500
    %v1585 = vunpack.c.l.b16 %v1501
    %v1586 = vunpack.c.h.b16 %v1501
    %v1587 = vunpack.c.l.b16 %v1502
    %v1588 = vunpack.c.h.b16 %v1502
    %v1589 = vunpack.c.l.b16 %v1503
    %v1590 = vunpack.c.h.b16 %v1503
    %v1591 = vunpack.c.l.b16 %v1504
    %v1592 = vunpack.c.h.b16 %v1504
    %v1593 = vunpack.c.l.b16 %v1505
    %v1594 = vunpack.c.h.b16 %v1505
    %v1595 = vunpack.c.l.b16 %v1506
    %v1596 = vunpack.c.h.b16 %v1506
    %v1597 = vunpack.c.l.b16 %v1507
    %v1598 = vunpack.c.h.b16 %v1507
    %v1599 = vunpack.c.l.b16 %v1508
    %v1600 = vunpack.c.h.b16 %v1508
    %v1601 = vunpack.c.l.b16 %v1509
    %v1602 = vunpack.c.h.b16 %v1509
    %v1603 = vunpack.c.l.b16 %v1510
    %v1604 = vunpack.c.h.b16 %v1510
    %v1605 = vunpack.c.l.b16 %v1511
    %v1606 = vunpack.c.h.b16 %v1511
    %v1607 = vunpack.c.l.b16 %v1512
    %v1608 = vunpack.c.h.b16 %v1512
    %v1609 = vunpack.c.l.b16 %v1513
    %v1610 = vunpack.c.h.b16 %v1513
    %v1611 = vunpack.c.l.b16 %v1514
    %v1612 = vunpack.c.h.b16 %v1514
    %v1613 = vunpack.c.l.b16 %v1515
    %v1614 = vunpack.c.h.b16 %v1515
    %v1615 = vunpack.c.l.b16 %v1516
    %v1616 = vunpack.c.h.b16 %v1516
    %v1617 = vunpack.c.l.b16 %v1517
    %v1618 = vunpack.c.h.b16 %v1517
    %v1619 = vunpack.c.l.b16 %v1518
    %v1620 = vunpack.c.h.b16 %v1518
    %v1621 = vunpack.c.l.b16 %v1519
    %v1622 = vunpack.c.h.b16 %v1519
    %v1623 = vunpack.c.l.b16 %v1520
    %v1624 = vunpack.c.h.b16 %v1520
    %v1625 = vunpack.c.l.b16 %v1521
    %v1626 = vunpack.c.h.b16 %v1521
    %v1627 = vunpack.c.l.b16 %v1522
    %v1628 = vunpack.c.h.b16 %v1522
    %v1629 = vunpack.c.l.b16 %v1523
    %v1630 = vunpack.c.h.b16 %v1523
    %v1631 = vunpack.c.l.b16 %v1524
    %v1632 = vunpack.c.h.b16 %v1524
    %v1633 = vpack.c.b16 %v1571, %v1569
    %v1634 = vpack.c.b16 %v1572, %v1570
    %v1635 = vpack.c.b16 %v1575, %v1573
    %v1636 = vpack.c.b16 %v1576, %v1574
    %v1637 = vpack.c.b16 %v1579, %v1577
    %v1638 = vpack.c.b16 %v1580, %v1578
    %v1639 = vpack.c.b16 %v1583, %v1581
    %v1640 = vpack.c.b16 %v1584, %v1582
    %v1641 = vpack.c.b16 %v1587, %v1585
    %v1642 = vpack.c.b16 %v1588, %v1586
    %v1643 = vpack.c.b16 %v1591, %v1589
    %v1644 = vpack.c.b16 %v1592, %v1590
    %v1645 = vpack.c.b16 %v1595, %v1593
    %v1646 = vpack.c.b16 %v1596, %v1594
    %v1647 = vpack.c.b16 %v1599, %v1597
    %v1648 = vpack.c.b16 %v1600, %v1598
    %v1649 = vpack.c.b16 %v1603, %v1601
    %v1650 = vpack.c.b16 %v1604, %v1602
    %v1651 = vpack.c.b16 %v1607, %v1605
    %v1652 = vpack.c.b16 %v1608, %v1606
    %v1653 = vpack.c.b16 %v1611, %v1609
    %v1654 = vpack.c.b16 %v1612, %v1610
    %v1655 = vpack.c.b16 %v1615, %v1613
    %v1656 = vpack.c.b16 %v1616, %v1614
    %v1657 = vpack.c.b16 %v1619, %v1617
    %v1658 = vpack.c.b16 %v1620, %v1618
    %v1659 = vpack.c.b16 %v1623, %v1621
    %v1660 = vpack.c.b16 %v1624, %v1622
    %v1661 = vpack.c.b16 %v1627, %v1625
    %v1662 = vpack.c.b16 %v1628, %v1626
    %v1663 = vpack.c.b16 %v1631, %v1629
    %v1664 = vpack.c.b16 %v1632, %v1630
    %1697 = vmatprep.subr.bf16.mxu0 %v1634
    %1698 = vmatpush1.bf16.msra.mxu0 %v1633
    %1699 = vmatprep.subr.bf16.mxu0 %v1636
    %1700 = vmatpush1.bf16.msra.mxu0 %v1635
    %1701 = vmatprep.subr.bf16.mxu0 %v1638
    %1702 = vmatpush1.bf16.msra.mxu0 %v1637
    %1703 = vmatprep.subr.bf16.mxu0 %v1640
    %1704 = vmatpush1.bf16.msra.mxu0 %v1639
    %1705 = vmatprep.subr.bf16.mxu0 %v1642
    %1706 = vmatpush1.bf16.msra.mxu0 %v1641
    %1707 = vmatprep.subr.bf16.mxu0 %v1644
    %1708 = vmatpush1.bf16.msra.mxu0 %v1643
    %1709 = vmatprep.subr.bf16.mxu0 %v1646
    %1710 = vmatpush1.bf16.msra.mxu0 %v1645
    %1711 = vmatprep.subr.bf16.mxu0 %v1648
    %1712 = vmatpush1.bf16.msra.mxu0 %v1647
    %1713 = vmatprep.subr.bf16.mxu0 %v1650
    %1714 = vmatpush1.bf16.msra.mxu0 %v1649
    %1715 = vmatprep.subr.bf16.mxu0 %v1652
    %1716 = vmatpush1.bf16.msra.mxu0 %v1651
    %1717 = vmatprep.subr.bf16.mxu0 %v1654
    %1718 = vmatpush1.bf16.msra.mxu0 %v1653
    %1719 = vmatprep.subr.bf16.mxu0 %v1656
    %1720 = vmatpush1.bf16.msra.mxu0 %v1655
    %1721 = vmatprep.subr.bf16.mxu0 %v1658
    %1722 = vmatpush1.bf16.msra.mxu0 %v1657
    %1723 = vmatprep.subr.bf16.mxu0 %v1660
    %1724 = vmatpush1.bf16.msra.mxu0 %v1659
    %1725 = vmatprep.subr.bf16.mxu0 %v1662
    %1726 = vmatpush1.bf16.msra.mxu0 %v1661
    %1727 = vmatprep.subr.bf16.mxu0 %v1664
    %1728 = vmatpush1.bf16.msra.mxu0 %v1663
    %1729 = vmatprep.mubr.bf16.mxu0 %v1492
    %1730 = vmatmul.mubr.bf16.gmra.mrb[0].mxu0 %v1491
    %v1731 = vpop.f32.mrb[0].mxu0
    %v1732 = vadd.f32 %v1530, %v1731
    %v1733 = vpop.f32.mrb[0].mxu0
    %v1734 = vadd.f32 %v1534, %v1733
    %v1735 = vpop.f32.mrb[0].mxu0
    %v1736 = vadd.f32 %v1530, %v1735
    %v1737 = vpop.f32.mrb[0].mxu0
    %v1738 = vadd.f32 %v1534, %v1737
    %1739 = vdwg.mxu0
    %v1740 = vmax.f32 %v1732, 0.0
    %v1741 = vmax.f32 %v1734, 0.0
    %v1742 = vmax.f32 %v1736, 0.0
    %v1743 = vmax.f32 %v1738, 0.0
    %v1744 = vpack.c.bf16 %v1742, %v1740
    %v1745 = vpack.c.bf16 %v1743, %v1741
    %v1746 = vld [vmem:[#allocation10] sm:$0xf]
    %v1747 = vld [vmem:[#allocation10 + $0x4] sm:$0xf]
    %v1748 = vld [vmem:[#allocation10 + $0x8] sm:$0xf]
    %v1749 = vld [vmem:[#allocation10 + $0xc] sm:$0xf]
    %v1750 = vld [vmem:[#allocation10 + $0x10] sm:$0xf]
    %v1751 = vld [vmem:[#allocation10 + $0x14] sm:$0xf]
    %v1752 = vld [vmem:[#allocation10 + $0x18] sm:$0xf]
    %v1753 = vld [vmem:[#allocation10 + $0x1c] sm:$0xf]
    %v1754 = vld [vmem:[#allocation10 + $0x20] sm:$0xf]
    %v1755 = vld [vmem:[#allocation10 + $0x24] sm:$0xf]
    %v1756 = vld [vmem:[#allocation10 + $0x28] sm:$0xf]
    %v1757 = vld [vmem:[#allocation10 + $0x2c] sm:$0xf]
    %v1758 = vld [vmem:[#allocation10 + $0x30] sm:$0xf]
    %v1759 = vld [vmem:[#allocation10 + $0x34] sm:$0xf]
    %v1760 = vld [vmem:[#allocation10 + $0x38] sm:$0xf]
    %v1761 = vld [vmem:[#allocation10 + $0x3c] sm:$0xf]
    %v1762 = vld [vmem:[#allocation10 + $0x40] sm:$0xf]
    %v1763 = vld [vmem:[#allocation10 + $0x44] sm:$0xf]
    %v1764 = vld [vmem:[#allocation10 + $0x48] sm:$0xf]
    %v1765 = vld [vmem:[#allocation10 + $0x4c] sm:$0xf]
    %v1766 = vld [vmem:[#allocation10 + $0x50] sm:$0xf]
    %v1767 = vld [vmem:[#allocation10 + $0x54] sm:$0xf]
    %v1768 = vld [vmem:[#allocation10 + $0x58] sm:$0xf]
    %v1769 = vld [vmem:[#allocation10 + $0x5c] sm:$0xf]
    %v1770 = vld [vmem:[#allocation10 + $0x60] sm:$0xf]
    %v1771 = vld [vmem:[#allocation10 + $0x64] sm:$0xf]
    %v1772 = vld [vmem:[#allocation10 + $0x68] sm:$0xf]
    %v1773 = vld [vmem:[#allocation10 + $0x6c] sm:$0xf]
    %v1774 = vld [vmem:[#allocation10 + $0x70] sm:$0xf]
    %v1775 = vld [vmem:[#allocation10 + $0x74] sm:$0xf]
    %v1776 = vld [vmem:[#allocation10 + $0x78] sm:$0xf]
    %v1777 = vld [vmem:[#allocation10 + $0x7c] sm:$0xf]
    %v1778 = vld [vmem:[%s8] sm:$0x1]
    %v1780 = vlaneseq
    %v1781 = vshrl.u32 %v1780, 7
    %v1782 = vsub.s32 0, %v1781
    %v1783 = vrot.slane %v1778, %v1782
    %v1817 = vunpack.c.l.b16 %v1746
    %v1818 = vunpack.c.l.b16 %v1747
    %v1819 = vunpack.c.l.b16 %v1748
    %v1820 = vunpack.c.l.b16 %v1749
    %v1821 = vunpack.c.l.b16 %v1750
    %v1822 = vunpack.c.l.b16 %v1751
    %v1823 = vunpack.c.l.b16 %v1752
    %v1824 = vunpack.c.l.b16 %v1753
    %v1825 = vunpack.c.l.b16 %v1754
    %v1826 = vunpack.c.l.b16 %v1755
    %v1827 = vunpack.c.l.b16 %v1756
    %v1828 = vunpack.c.l.b16 %v1757
    %v1829 = vunpack.c.l.b16 %v1758
    %v1830 = vunpack.c.l.b16 %v1759
    %v1831 = vunpack.c.l.b16 %v1760
    %v1832 = vunpack.c.l.b16 %v1761
    %v1833 = vunpack.c.l.b16 %v1762
    %v1834 = vunpack.c.l.b16 %v1763
    %v1835 = vunpack.c.l.b16 %v1764
    %v1836 = vunpack.c.l.b16 %v1765
    %v1837 = vunpack.c.l.b16 %v1766
    %v1838 = vunpack.c.l.b16 %v1767
    %v1839 = vunpack.c.l.b16 %v1768
    %v1840 = vunpack.c.l.b16 %v1769
    %v1841 = vunpack.c.l.b16 %v1770
    %v1842 = vunpack.c.l.b16 %v1771
    %v1843 = vunpack.c.l.b16 %v1772
    %v1844 = vunpack.c.l.b16 %v1773
    %v1845 = vunpack.c.l.b16 %v1774
    %v1846 = vunpack.c.l.b16 %v1775
    %v1847 = vunpack.c.l.b16 %v1776
    %v1848 = vunpack.c.l.b16 %v1777
    %v1849 = vpack.c.b16 %v1818, %v1817
    %v1850 = vpack.c.b16 %v1820, %v1819
    %v1851 = vpack.c.b16 %v1822, %v1821
    %v1852 = vpack.c.b16 %v1824, %v1823
    %v1853 = vpack.c.b16 %v1826, %v1825
    %v1854 = vpack.c.b16 %v1828, %v1827
    %v1855 = vpack.c.b16 %v1830, %v1829
    %v1856 = vpack.c.b16 %v1832, %v1831
    %v1857 = vpack.c.b16 %v1834, %v1833
    %v1858 = vpack.c.b16 %v1836, %v1835
    %v1859 = vpack.c.b16 %v1838, %v1837
    %v1860 = vpack.c.b16 %v1840, %v1839
    %v1861 = vpack.c.b16 %v1842, %v1841
    %v1862 = vpack.c.b16 %v1844, %v1843
    %v1863 = vpack.c.b16 %v1846, %v1845
    %v1864 = vpack.c.b16 %v1848, %v1847
    %1881 = vmatprep.subr.bf16.mxu0 0
    %1882 = vmatpush1.bf16.msra.mxu0 %v1849
    %1883 = vmatprep.subr.bf16.mxu0 0
    %1884 = vmatpush1.bf16.msra.mxu0 %v1850
    %1885 = vmatprep.subr.bf16.mxu0 0
    %1886 = vmatpush1.bf16.msra.mxu0 %v1851
    %1887 = vmatprep.subr.bf16.mxu0 0
    %1888 = vmatpush1.bf16.msra.mxu0 %v1852
    %1889 = vmatprep.subr.bf16.mxu0 0
    %1890 = vmatpush1.bf16.msra.mxu0 %v1853
    %1891 = vmatprep.subr.bf16.mxu0 0
    %1892 = vmatpush1.bf16.msra.mxu0 %v1854
    %1893 = vmatprep.subr.bf16.mxu0 0
    %1894 = vmatpush1.bf16.msra.mxu0 %v1855
    %1895 = vmatprep.subr.bf16.mxu0 0
    %1896 = vmatpush1.bf16.msra.mxu0 %v1856
    %1897 = vmatprep.subr.bf16.mxu0 0
    %1898 = vmatpush1.bf16.msra.mxu0 %v1857
    %1899 = vmatprep.subr.bf16.mxu0 0
    %1900 = vmatpush1.bf16.msra.mxu0 %v1858
    %1901 = vmatprep.subr.bf16.mxu0 0
    %1902 = vmatpush1.bf16.msra.mxu0 %v1859
    %1903 = vmatprep.subr.bf16.mxu0 0
    %1904 = vmatpush1.bf16.msra.mxu0 %v1860
    %1905 = vmatprep.subr.bf16.mxu0 0
    %1906 = vmatpush1.bf16.msra.mxu0 %v1861
    %1907 = vmatprep.subr.bf16.mxu0 0
    %1908 = vmatpush1.bf16.msra.mxu0 %v1862
    %1909 = vmatprep.subr.bf16.mxu0 0
    %1910 = vmatpush1.bf16.msra.mxu0 %v1863
    %1911 = vmatprep.subr.bf16.mxu0 0
    %1912 = vmatpush1.bf16.msra.mxu0 %v1864
    %1913 = vmatprep.mubr.bf16.mxu0 %v1745
    %1914 = vmatmul.mubr.bf16.gmra.mrb[0].mxu0 %v1744
    %v1915 = vpop.f32.mrb[0].mxu0
    %v1916 = vadd.f32 %v1783, %v1915
    %v1917 = vpop.f32.mrb[0].mxu0
    %v1918 = vpop.f32.mrb[0].mxu0
    %v1919 = vadd.f32 %v1783, %v1918
    %v1920 = vpop.f32.mrb[0].mxu0
    %1921 = vdwg.mxu0
    %1922 = vmax.xlane.f32.xlu0 %v1916
    %v1923 = vpop.xlane.xlu0 %1922
    %1924 = vmax.xlane.f32.xlu0 %v1919
    %v1925 = vpop.xlane.xlu0 %1924
    %v1926 = vsub.f32 %v1916, %v1923
    %v1927 = vsub.f32 %v1919, %v1925
    %v1928 = vmul.f32 %v1926, 1.442695
    %v1929 = vpow.pop %v1928
    %v1930 = vmul.f32 %v1927, 1.442695
    %v1931 = vpow.pop %v1930
    %1932 = vadd.xlane.f32.xlu0 %v1929
    %v1933 = vpop.xlane.xlu0 %1932
    %1934 = vadd.xlane.f32.xlu0 %v1931
    %v1935 = vpop.xlane.xlu0 %1934
    %v1936 = vrcp.pop %v1933
    %v1937 = vrcp.pop %v1935
    %v1938 = vmul.f32 %v1929, %v1936
    %v1939 = vmul.f32 %v1931, %v1937
    %1940 = vst [vmem:[#allocation11] sm:$0xff] %v1938
    %1941 = vst [vmem:[#allocation11 + $0x8] sm:$0xff] %v1939
    // Predicated region
    $region58: #{tpu_custom_call.1} parent=1 // pred_check
      _
    $region59: #{tpu_custom_call.1} parent=1 // pred_check_branch
      %1943 = sbr.rel (0) target = $region61
    $region60: #{tpu_custom_call.1} parent=1 // pred_region
      %s1945 = ssub.s32 256, 256
      %1946 = vsyncadd [#allocation4], %s1945
      %s1947 = sshll.u32 [#allocation11], 4
      %s1948 = int_to_ptr.vmem [resolvable:$true] %s1947
      %1953 = dma.vmem_to_hbm [thread:$0]  %s1948, 256, %s9, [#allocation4], 128, 128, 8
    $region61: #{tpu_custom_call.1} parent=1 // pred_fallthru
      _
    // Predicated region
    $region62: #{tpu_custom_call.1} parent=1 // pred_check
      _
    $region63: #{tpu_custom_call.1} parent=1 // pred_check_branch
      %1955 = sbr.rel (0) target = $region65
    $region64: #{tpu_custom_call.1} parent=1 // pred_region
      %1956 = dma.done [#allocation4], 256
    $region65: #{tpu_custom_call.1} parent=1 // pred_fallthru
      _
    %1957 = vsyncpa [#allocation3], 1
    %1958 = vsyncpa [#allocation6], 1
    %1959 = vsyncpa [#allocation9], 1
    %1960 = vsyncpa [#allocation4], 1

</llo_original>
